<compile_context>
chip_gen: v7x
topology: tpu7x:2x2x1
jax: 0.10.0
libtpu: 0.0.40
codegen_flags: <defaults>
</compile_context>

<pallas_src>
import jax
import jax.numpy as jnp
from jax import lax
from jax.experimental import pallas as pl
from jax.experimental.pallas import tpu as pltpu

BN_EPS_DEFAULT = 1e-5  # standard nn.BatchNorm2d default


def _round_up(x, m):
    return (x + m - 1) // m * m


def conv_block_forward(x_nchw, weight, bias, gamma, beta, *, stride=1, padding=1,
                       eps=BN_EPS_DEFAULT, apply_relu=True,
                       compute_dtype=jnp.bfloat16):
    """Fused Conv2d + train-mode BatchNorm2d + (optional) ReLU.

    x_nchw: (N, Cin, H, W) f32; weight: (Cout, Cin, KH, KW) (PyTorch layouts).
    Returns (N, Cout, OH, OW) f32 in NCHW, matching the PyTorch module.

    `bias` is accepted for API parity but unused: the train-mode BatchNorm that
    immediately follows the conv cancels it exactly (mean shift).
    """
    del bias
    assert stride == 1, "fused kernel implements stride=1 (ConvBlock default)"

    N, Cin, H, W = x_nchw.shape
    Cout, Cin_w, KH, KW = weight.shape
    assert Cin_w == Cin
    p = padding
    Hp, Wp = H + 2 * p, W + 2 * p
    OH, OW = Hp - KH + 1, Wp - KW + 1
    L = OH * Wp                                   # flat output extent per image
    Sp = _round_up(Hp * Wp + KW - 1, 128)         # flat padded-input extent (+tail)

    # ---- wrapper prep: single cheap pass over the input (pad + cast) --------
    xp = jnp.pad(x_nchw, ((0, 0), (0, 0), (p, p), (p, p)))
    xflat = jnp.pad(xp.reshape(N, Cin, Hp * Wp),
                    ((0, 0), (0, 0), (0, Sp - Hp * Wp))).astype(compute_dtype)
    w_r = jnp.transpose(weight, (2, 3, 0, 1)).reshape(KH * KW, Cout, Cin)
    w_r = w_r.astype(compute_dtype)               # (KH*KW, Cout, Cin), resident
    # Valid-column mask over the flat output axis: lanes whose column index
    # falls in the W-padding region are "junk" (they mix adjacent rows).  They
    # are masked out of the BN statistics and cropped away by pass 2.
    valid = (jnp.arange(L, dtype=jnp.int32) % Wp < OW)
    valid = valid.astype(jnp.float32).reshape(1, L)

    offsets = [ki * Wp + kj for ki in range(KH) for kj in range(KW)]

    # ---------------- pass 1: fused im2col conv + BN partial stats -----------
    def conv_stats_kernel(x_ref, w_ref, mask_ref, conv_ref, psum_ref, psq_ref):
        x = x_ref[...]                            # (Cin, Sp) bf16
        w = w_ref[...]                            # (KH*KW, Cout, Cin) bf16
        acc = jnp.zeros((Cout, L), jnp.float32)
        for t, off in enumerate(offsets):         # static unroll over KH*KW taps
            acc += jnp.dot(w[t], x[:, off:off + L],
                           preferred_element_type=jnp.float32)
        m = mask_ref[...]                         # (1, L) 0/1
        acc_m = acc * m
        # stats from the f32 accumulator (before the bf16 cast), junk masked
        psum_ref[...] = jnp.sum(acc_m, axis=1, keepdims=True)       # (Cout, 1)
        psq_ref[...] = jnp.sum(acc_m * acc, axis=1, keepdims=True)  # (Cout, 1)
        conv_ref[...] = acc.astype(compute_dtype)                   # bf16 store

    bytes1 = (N * (Cin * Sp + Cout * L) * 2 + N * Cout * 2 * 4
              + KH * KW * Cout * Cin * 2 + L * 4)
    cost1 = pl.CostEstimate(flops=2 * N * KH * KW * Cout * Cin * L,
                            transcendentals=0, bytes_accessed=bytes1)

    conv_flat, psum, psq = pl.pallas_call(
        conv_stats_kernel,
        grid=(N,),                                # demo N=2 -> both v7x cores
        in_specs=[
            pl.BlockSpec((None, Cin, Sp), lambda n: (n, 0, 0)),
            pl.BlockSpec((KH * KW, Cout, Cin), lambda n: (0, 0, 0),
                         pipeline_mode=pl.Buffered(1)),   # VMEM-resident weights
            pl.BlockSpec((1, L), lambda n: (0, 0),
                         pipeline_mode=pl.Buffered(1)),   # VMEM-resident mask
        ],
        out_specs=(
            pl.BlockSpec((None, Cout, L), lambda n: (n, 0, 0)),
            pl.BlockSpec((None, Cout, 1), lambda n: (n, 0, 0)),
            pl.BlockSpec((None, Cout, 1), lambda n: (n, 0, 0)),
        ),
        out_shape=(
            jax.ShapeDtypeStruct((N, Cout, L), compute_dtype),
            jax.ShapeDtypeStruct((N, Cout, 1), jnp.float32),
            jax.ShapeDtypeStruct((N, Cout, 1), jnp.float32),
        ),
        compiler_params=pltpu.CompilerParams(
            dimension_semantics=("parallel",)),
        cost_estimate=cost1,
    )(xflat, w_r, valid)

    # ---- tiny glue: global BN stats -> one folded scale/shift per channel ---
    count = N * OH * OW                           # real (unmasked) elements
    sum_c = jnp.sum(psum, axis=0)[:, 0]           # (Cout,)
    sq_c = jnp.sum(psq, axis=0)[:, 0]
    mean = sum_c / count
    var = jnp.maximum(sq_c / count - mean * mean, 0.0)   # biased, train-mode
    inv_std = lax.rsqrt(var + eps)
    g = gamma.astype(jnp.float32) * inv_std
    scale = g.reshape(Cout, 1, 1)
    shift = (beta.astype(jnp.float32) - mean * g).reshape(Cout, 1, 1)

    # ---------------- pass 2: folded BN affine + ReLU, crop to NCHW ----------
    conv4d = conv_flat.reshape(N, Cout, OH, Wp)   # contiguous -> metadata-only

    def bn_act_kernel(conv_ref, scale_ref, shift_ref, out_ref):
        y = conv_ref[:, :, :OW].astype(jnp.float32) * scale_ref[...] + shift_ref[...]
        if apply_relu:
            y = jnp.maximum(y, 0.0)
        out_ref[...] = y

    bytes2 = N * Cout * OH * (Wp * 2 + OW * 4) + 2 * Cout * 4
    cost2 = pl.CostEstimate(flops=3 * N * Cout * OH * OW,
                            transcendentals=0, bytes_accessed=bytes2)

    out = pl.pallas_call(
        bn_act_kernel,
        grid=(N,),
        in_specs=[
            pl.BlockSpec((None, Cout, OH, Wp), lambda n: (n, 0, 0, 0)),
            pl.BlockSpec((Cout, 1, 1), lambda n: (0, 0, 0),
                         pipeline_mode=pl.Buffered(1)),   # resident scale
            pl.BlockSpec((Cout, 1, 1), lambda n: (0, 0, 0),
                         pipeline_mode=pl.Buffered(1)),   # resident shift
        ],
        out_specs=pl.BlockSpec((None, Cout, OH, OW), lambda n: (n, 0, 0, 0)),
        out_shape=jax.ShapeDtypeStruct((N, Cout, OH, OW), jnp.float32),
        compiler_params=pltpu.CompilerParams(
            dimension_semantics=("parallel",)),
        cost_estimate=cost2,
    )(conv4d, scale, shift)

    return out


def reference_forward(x_nchw, weight, bias, gamma, beta, *, stride=1, padding=1,
                      eps=BN_EPS_DEFAULT, apply_relu=True):
    conv = lax.conv_general_dilated(
        x_nchw, weight, window_strides=(stride, stride),
        padding=[(padding, padding), (padding, padding)],
        dimension_numbers=("NCHW", "OIHW", "NCHW"))
    conv = conv + bias.reshape(1, -1, 1, 1)
    mean = jnp.mean(conv, axis=(0, 2, 3), keepdims=True)
    var = jnp.mean((conv - mean) ** 2, axis=(0, 2, 3), keepdims=True)
    y = (conv - mean) * lax.rsqrt(var + eps)
    y = y * gamma.reshape(1, -1, 1, 1) + beta.reshape(1, -1, 1, 1)
    return jnp.maximum(y, 0.0) if apply_relu else y


if __name__ == "__main__":
    # ConvBlock(in_channels=4, out_channels=8, kernel_size=3, stride=1,
    #           padding=1, bias=True, activation=ReLU)
    N, Cin, H, W = 2, 4, 16, 16
    Cout, KH, KW = 8, 3, 3
    stride, padding = 1, 1
    # OPN.py constructs `nn.BatchNorm2d(out_channels, out_channels)`, i.e. the
    # second positional argument (eps) is out_channels; reproduce that here.
    eps = float(Cout)

    key = jax.random.PRNGKey(0)
    kx, kw_, kb = jax.random.split(key, 3)

    x = jax.random.normal(kx, (N, Cin, H, W), dtype=jnp.float32)
    # init_He: Kaiming-normal (fan_in, relu) for the conv weight
    fan_in = Cin * KH * KW
    he_std = (2.0 / fan_in) ** 0.5
    weight = he_std * jax.random.normal(kw_, (Cout, Cin, KH, KW), dtype=jnp.float32)
    bias = 0.1 * jax.random.normal(kb, (Cout,), dtype=jnp.float32)
    gamma = jnp.ones((Cout,), dtype=jnp.float32)   # BatchNorm2d default affine init
    beta = jnp.zeros((Cout,), dtype=jnp.float32)

    out = conv_block_forward(x, weight, bias, gamma, beta,
                             stride=stride, padding=padding, eps=eps)
    out = jax.block_until_ready(out)

    ref = reference_forward(x, weight, bias, gamma, beta,
                            stride=stride, padding=padding, eps=eps)
    ref = jax.block_until_ready(ref)

    assert out.shape == (N, Cout, H, W), out.shape
    # bf16 MXU inputs with f32 accumulation -> 2e-2 tolerance vs full-f32 ref.
    max_err = float(jnp.max(jnp.abs(out - ref)))
    assert jnp.allclose(out, ref, atol=2e-2, rtol=2e-2), max_err

    print("KERNEL_OK")
</pallas_src>

<mosaic_0001>
module attributes {stable_mosaic.version = 11 : i64} {
  func.func @conv_stats_kernel(%arg0: i32, %arg1: memref<1x4x384xbf16, #tpu.memory_space<vmem>>, %arg2: memref<9x8x4xbf16, #tpu.memory_space<vmem>>, %arg3: memref<1x288xf32, #tpu.memory_space<vmem>>, %arg4: memref<1x8x288xbf16, #tpu.memory_space<vmem>>, %arg5: memref<1x8x1xf32, #tpu.memory_space<vmem>>, %arg6: memref<1x8x1xf32, #tpu.memory_space<vmem>>) attributes {dimension_semantics = [#tpu.dimension_semantics<parallel>], iteration_bounds = array<i64: 2>, scalar_prefetch = 0 : i64, scratch_operands = 0 : i64, tpu.core_type = #tpu.core_type<tc>, window_params = [{transform_indices = @transform_0, window_bounds = array<i64: 1, 4, 384>}, {pipeline_mode = #tpu.pipeline_mode<synchronous>, transform_indices = @transform_1, window_bounds = array<i64: 9, 8, 4>}, {pipeline_mode = #tpu.pipeline_mode<synchronous>, transform_indices = @transform_2, window_bounds = array<i64: 1, 288>}, {transform_indices = @transform_3, window_bounds = array<i64: 1, 8, 288>}, {transform_indices = @transform_4, window_bounds = array<i64: 1, 8, 1>}, {transform_indices = @transform_5, window_bounds = array<i64: 1, 8, 1>}]} {
    %c0 = arith.constant 0 : index
    %c0_0 = arith.constant 0 : index
    %c0_1 = arith.constant 0 : index
    %0 = vector.load %arg1[%c0, %c0_0, %c0_1] : memref<1x4x384xbf16, #tpu.memory_space<vmem>>, vector<1x4x384xbf16>
    %1 = vector.shape_cast %0 : vector<1x4x384xbf16> to vector<4x384xbf16>
    %c0_2 = arith.constant 0 : index
    %c0_3 = arith.constant 0 : index
    %c0_4 = arith.constant 0 : index
    %2 = vector.load %arg2[%c0_2, %c0_3, %c0_4] : memref<9x8x4xbf16, #tpu.memory_space<vmem>>, vector<9x8x4xbf16>
    %cst = arith.constant 0.000000e+00 : f32
    %3 = vector.broadcast %cst : f32 to vector<8x288xf32>
    %4 = vector.extract_strided_slice %2 {offsets = [0, 0, 0], sizes = [1, 8, 4], strides = [1, 1, 1]} : vector<9x8x4xbf16> to vector<1x8x4xbf16>
    %5 = vector.shape_cast %4 : vector<1x8x4xbf16> to vector<8x4xbf16>
    %6 = vector.extract_strided_slice %1 {offsets = [0, 0], sizes = [4, 288], strides = [1, 1]} : vector<4x384xbf16> to vector<4x288xbf16>
    %cst_5 = arith.constant dense<0.000000e+00> : vector<8x288xf32>
    %7 = tpu.matmul %5, %6, %cst_5 {dimension_numbers = #tpu.dot_dimension_numbers<[1], [0], [0], [1], [0, 0, 1, 1], [], []>} : vector<8x4xbf16>, vector<4x288xbf16>, vector<8x288xf32> -> vector<8x288xf32>
    %8 = arith.addf %3, %7 : vector<8x288xf32>
    %9 = vector.extract_strided_slice %2 {offsets = [1, 0, 0], sizes = [1, 8, 4], strides = [1, 1, 1]} : vector<9x8x4xbf16> to vector<1x8x4xbf16>
    %10 = vector.shape_cast %9 : vector<1x8x4xbf16> to vector<8x4xbf16>
    %11 = vector.extract_strided_slice %1 {offsets = [0, 1], sizes = [4, 288], strides = [1, 1]} : vector<4x384xbf16> to vector<4x288xbf16>
    %cst_6 = arith.constant dense<0.000000e+00> : vector<8x288xf32>
    %12 = tpu.matmul %10, %11, %cst_6 {dimension_numbers = #tpu.dot_dimension_numbers<[1], [0], [0], [1], [0, 0, 1, 1], [], []>} : vector<8x4xbf16>, vector<4x288xbf16>, vector<8x288xf32> -> vector<8x288xf32>
    %13 = arith.addf %8, %12 : vector<8x288xf32>
    %14 = vector.extract_strided_slice %2 {offsets = [2, 0, 0], sizes = [1, 8, 4], strides = [1, 1, 1]} : vector<9x8x4xbf16> to vector<1x8x4xbf16>
    %15 = vector.shape_cast %14 : vector<1x8x4xbf16> to vector<8x4xbf16>
    %16 = vector.extract_strided_slice %1 {offsets = [0, 2], sizes = [4, 288], strides = [1, 1]} : vector<4x384xbf16> to vector<4x288xbf16>
    %cst_7 = arith.constant dense<0.000000e+00> : vector<8x288xf32>
    %17 = tpu.matmul %15, %16, %cst_7 {dimension_numbers = #tpu.dot_dimension_numbers<[1], [0], [0], [1], [0, 0, 1, 1], [], []>} : vector<8x4xbf16>, vector<4x288xbf16>, vector<8x288xf32> -> vector<8x288xf32>
    %18 = arith.addf %13, %17 : vector<8x288xf32>
    %19 = vector.extract_strided_slice %2 {offsets = [3, 0, 0], sizes = [1, 8, 4], strides = [1, 1, 1]} : vector<9x8x4xbf16> to vector<1x8x4xbf16>
    %20 = vector.shape_cast %19 : vector<1x8x4xbf16> to vector<8x4xbf16>
    %21 = vector.extract_strided_slice %1 {offsets = [0, 18], sizes = [4, 288], strides = [1, 1]} : vector<4x384xbf16> to vector<4x288xbf16>
    %cst_8 = arith.constant dense<0.000000e+00> : vector<8x288xf32>
    %22 = tpu.matmul %20, %21, %cst_8 {dimension_numbers = #tpu.dot_dimension_numbers<[1], [0], [0], [1], [0, 0, 1, 1], [], []>} : vector<8x4xbf16>, vector<4x288xbf16>, vector<8x288xf32> -> vector<8x288xf32>
    %23 = arith.addf %18, %22 : vector<8x288xf32>
    %24 = vector.extract_strided_slice %2 {offsets = [4, 0, 0], sizes = [1, 8, 4], strides = [1, 1, 1]} : vector<9x8x4xbf16> to vector<1x8x4xbf16>
    %25 = vector.shape_cast %24 : vector<1x8x4xbf16> to vector<8x4xbf16>
    %26 = vector.extract_strided_slice %1 {offsets = [0, 19], sizes = [4, 288], strides = [1, 1]} : vector<4x384xbf16> to vector<4x288xbf16>
    %cst_9 = arith.constant dense<0.000000e+00> : vector<8x288xf32>
    %27 = tpu.matmul %25, %26, %cst_9 {dimension_numbers = #tpu.dot_dimension_numbers<[1], [0], [0], [1], [0, 0, 1, 1], [], []>} : vector<8x4xbf16>, vector<4x288xbf16>, vector<8x288xf32> -> vector<8x288xf32>
    %28 = arith.addf %23, %27 : vector<8x288xf32>
    %29 = vector.extract_strided_slice %2 {offsets = [5, 0, 0], sizes = [1, 8, 4], strides = [1, 1, 1]} : vector<9x8x4xbf16> to vector<1x8x4xbf16>
    %30 = vector.shape_cast %29 : vector<1x8x4xbf16> to vector<8x4xbf16>
    %31 = vector.extract_strided_slice %1 {offsets = [0, 20], sizes = [4, 288], strides = [1, 1]} : vector<4x384xbf16> to vector<4x288xbf16>
    %cst_10 = arith.constant dense<0.000000e+00> : vector<8x288xf32>
    %32 = tpu.matmul %30, %31, %cst_10 {dimension_numbers = #tpu.dot_dimension_numbers<[1], [0], [0], [1], [0, 0, 1, 1], [], []>} : vector<8x4xbf16>, vector<4x288xbf16>, vector<8x288xf32> -> vector<8x288xf32>
    %33 = arith.addf %28, %32 : vector<8x288xf32>
    %34 = vector.extract_strided_slice %2 {offsets = [6, 0, 0], sizes = [1, 8, 4], strides = [1, 1, 1]} : vector<9x8x4xbf16> to vector<1x8x4xbf16>
    %35 = vector.shape_cast %34 : vector<1x8x4xbf16> to vector<8x4xbf16>
    %36 = vector.extract_strided_slice %1 {offsets = [0, 36], sizes = [4, 288], strides = [1, 1]} : vector<4x384xbf16> to vector<4x288xbf16>
    %cst_11 = arith.constant dense<0.000000e+00> : vector<8x288xf32>
    %37 = tpu.matmul %35, %36, %cst_11 {dimension_numbers = #tpu.dot_dimension_numbers<[1], [0], [0], [1], [0, 0, 1, 1], [], []>} : vector<8x4xbf16>, vector<4x288xbf16>, vector<8x288xf32> -> vector<8x288xf32>
    %38 = arith.addf %33, %37 : vector<8x288xf32>
    %39 = vector.extract_strided_slice %2 {offsets = [7, 0, 0], sizes = [1, 8, 4], strides = [1, 1, 1]} : vector<9x8x4xbf16> to vector<1x8x4xbf16>
    %40 = vector.shape_cast %39 : vector<1x8x4xbf16> to vector<8x4xbf16>
    %41 = vector.extract_strided_slice %1 {offsets = [0, 37], sizes = [4, 288], strides = [1, 1]} : vector<4x384xbf16> to vector<4x288xbf16>
    %cst_12 = arith.constant dense<0.000000e+00> : vector<8x288xf32>
    %42 = tpu.matmul %40, %41, %cst_12 {dimension_numbers = #tpu.dot_dimension_numbers<[1], [0], [0], [1], [0, 0, 1, 1], [], []>} : vector<8x4xbf16>, vector<4x288xbf16>, vector<8x288xf32> -> vector<8x288xf32>
    %43 = arith.addf %38, %42 : vector<8x288xf32>
    %44 = vector.extract_strided_slice %2 {offsets = [8, 0, 0], sizes = [1, 8, 4], strides = [1, 1, 1]} : vector<9x8x4xbf16> to vector<1x8x4xbf16>
    %45 = vector.shape_cast %44 : vector<1x8x4xbf16> to vector<8x4xbf16>
    %46 = vector.extract_strided_slice %1 {offsets = [0, 38], sizes = [4, 288], strides = [1, 1]} : vector<4x384xbf16> to vector<4x288xbf16>
    %cst_13 = arith.constant dense<0.000000e+00> : vector<8x288xf32>
    %47 = tpu.matmul %45, %46, %cst_13 {dimension_numbers = #tpu.dot_dimension_numbers<[1], [0], [0], [1], [0, 0, 1, 1], [], []>} : vector<8x4xbf16>, vector<4x288xbf16>, vector<8x288xf32> -> vector<8x288xf32>
    %48 = arith.addf %43, %47 : vector<8x288xf32>
    %c0_14 = arith.constant 0 : index
    %c0_15 = arith.constant 0 : index
    %49 = vector.load %arg3[%c0_14, %c0_15] : memref<1x288xf32, #tpu.memory_space<vmem>>, vector<1x288xf32>
    %50 = vector.broadcast %49 : vector<1x288xf32> to vector<8x288xf32>
    %51 = arith.mulf %48, %50 : vector<8x288xf32>
    %cst_16 = arith.constant dense<0.000000e+00> : vector<8xf32>
    %52 = vector.multi_reduction <add>, %51, %cst_16 [1] : vector<8x288xf32> to vector<8xf32>
    %53 = vector.shape_cast %52 : vector<8xf32> to vector<8x1xf32>
    %c0_17 = arith.constant 0 : index
    %c0_18 = arith.constant 0 : index
    %c0_19 = arith.constant 0 : index
    %54 = vector.load %arg5[%c0_17, %c0_18, %c0_19] : memref<1x8x1xf32, #tpu.memory_space<vmem>>, vector<1x8x1xf32>
    %55 = vector.shape_cast %54 : vector<1x8x1xf32> to vector<8x1xf32>
    %56 = vector.shape_cast %53 : vector<8x1xf32> to vector<1x8x1xf32>
    tpu.vector_store %arg5[%c0_17, %c0_18, %c0_19], %56 {strides = array<i32>} : memref<1x8x1xf32, #tpu.memory_space<vmem>>, vector<1x8x1xf32>,
    %57 = arith.mulf %51, %48 : vector<8x288xf32>
    %cst_20 = arith.constant dense<0.000000e+00> : vector<8xf32>
    %58 = vector.multi_reduction <add>, %57, %cst_20 [1] : vector<8x288xf32> to vector<8xf32>
    %59 = vector.shape_cast %58 : vector<8xf32> to vector<8x1xf32>
    %c0_21 = arith.constant 0 : index
    %c0_22 = arith.constant 0 : index
    %c0_23 = arith.constant 0 : index
    %60 = vector.load %arg6[%c0_21, %c0_22, %c0_23] : memref<1x8x1xf32, #tpu.memory_space<vmem>>, vector<1x8x1xf32>
    %61 = vector.shape_cast %60 : vector<1x8x1xf32> to vector<8x1xf32>
    %62 = vector.shape_cast %59 : vector<8x1xf32> to vector<1x8x1xf32>
    tpu.vector_store %arg6[%c0_21, %c0_22, %c0_23], %62 {strides = array<i32>} : memref<1x8x1xf32, #tpu.memory_space<vmem>>, vector<1x8x1xf32>,
    %63 = arith.truncf %48 : vector<8x288xf32> to vector<8x288xbf16>
    %c0_24 = arith.constant 0 : index
    %c0_25 = arith.constant 0 : index
    %c0_26 = arith.constant 0 : index
    %64 = vector.load %arg4[%c0_24, %c0_25, %c0_26] : memref<1x8x288xbf16, #tpu.memory_space<vmem>>, vector<1x8x288xbf16>
    %65 = vector.shape_cast %64 : vector<1x8x288xbf16> to vector<8x288xbf16>
    %66 = vector.shape_cast %63 : vector<8x288xbf16> to vector<1x8x288xbf16>
    tpu.vector_store %arg4[%c0_24, %c0_25, %c0_26], %66 {strides = array<i32>} : memref<1x8x288xbf16, #tpu.memory_space<vmem>>, vector<1x8x288xbf16>,
    return
  }
  func.func @transform_0(%arg0: i32) -> (i32, i32, i32) {
    %c0_i32 = arith.constant 0 : i32
    %c0_i32_0 = arith.constant 0 : i32
    %c0_i32_1 = arith.constant 0 : i32
    return %arg0, %c0_i32, %c0_i32_0 : i32, i32, i32
  }
  func.func @transform_1(%arg0: i32) -> (i32, i32, i32) {
    %c0_i32 = arith.constant 0 : i32
    %c0_i32_0 = arith.constant 0 : i32
    %c0_i32_1 = arith.constant 0 : i32
    %c0_i32_2 = arith.constant 0 : i32
    return %c0_i32, %c0_i32_0, %c0_i32_1 : i32, i32, i32
  }
  func.func @transform_2(%arg0: i32) -> (i32, i32) {
    %c0_i32 = arith.constant 0 : i32
    %c0_i32_0 = arith.constant 0 : i32
    %c0_i32_1 = arith.constant 0 : i32
    return %c0_i32, %c0_i32_0 : i32, i32
  }
  func.func @transform_3(%arg0: i32) -> (i32, i32, i32) {
    %c0_i32 = arith.constant 0 : i32
    %c0_i32_0 = arith.constant 0 : i32
    %c0_i32_1 = arith.constant 0 : i32
    return %arg0, %c0_i32, %c0_i32_0 : i32, i32, i32
  }
  func.func @transform_4(%arg0: i32) -> (i32, i32, i32) {
    %c0_i32 = arith.constant 0 : i32
    %c0_i32_0 = arith.constant 0 : i32
    %c0_i32_1 = arith.constant 0 : i32
    return %arg0, %c0_i32, %c0_i32_0 : i32, i32, i32
  }
  func.func @transform_5(%arg0: i32) -> (i32, i32, i32) {
    %c0_i32 = arith.constant 0 : i32
    %c0_i32_0 = arith.constant 0 : i32
    %c0_i32_1 = arith.constant 0 : i32
    return %arg0, %c0_i32, %c0_i32_0 : i32, i32, i32
  }
}

</mosaic_0001>

<llo_original>
// kernel: tpu_custom_call.1
$region0: #{tpu_custom_call.1}
  #allocation0 [shape = 'u32[]', space=smem, size = 0x4, offset = 0x4, fixed_abs, tag = 'smem constant byte address 0x4 - core index']
  #allocation1 [shape = 'u32[144,128]{1,0:T(1,128)}', space=vmem, size = 0x12000, scoped, tag = 'internal scratch']
  %s0 = inlined_call_operand.vmem [shape: bf16[2,4,384], index: 0, kind: input, shape index: {}]
  %s1 = inlined_call_operand.vmem [shape: bf16[9,8,4], index: 1, kind: input, shape index: {}]
  %s2 = inlined_call_operand.vmem [shape: f32[1,288], index: 2, kind: input, shape index: {}]
  %s3 = inlined_call_operand.hbm [shape: bf16[2,8,288], index: 3, kind: output, shape index: {0}]
  %s4 = inlined_call_operand.vmem [shape: f32[2,8,1], index: 4, kind: output, shape index: {1}]
  %s5 = inlined_call_operand.vmem [shape: f32[2,8,1], index: 5, kind: output, shape index: {2}]
  %6 = xla_tuple %s3, %s4, %s5
  %s7 = sld [smem:[#allocation0]]
  $region61: #{tpu_custom_call.1} parent=0
    _
  %s9 = ssub.s32 1, %s7
  %s10 = scalar_select 0, %s9, %s7
  $region1: #{tpu_custom_call.1} parent=0
    #allocation2 [shape = 'u8[12288]{0}', space=vmem, size = 0x3000, scoped, tag = 'output window, operand 0']
    #allocation3 [shape = 's32[2]{0}', space=sflag, size = 0x8, scoped, tag = 'scoped memory for tpu_custom_call.1']
    %11 = vsyncpa [#allocation3], 0
    %s12 = scalar_lea.sflag [#allocation3], 1
    %13 = vsyncpa %s12, 0
    loop: start=0, step=1, limit=4
    $region2: #{tpu_custom_call.1} parent=1 // loop_pre_header
      _
    $region3: #{tpu_custom_call.1} parent=1 // loop_header
      %s15 = sphi 0, %s19
      %p16 = scmp.ge.s32.totalorder %s15, 4
      %s25 = sphi 0, %s27
      %s28 = sphi 0, %s25
      %s29 = sphi 0, %s28
      %s45 = sphi 0, %s29
      %s49 = sphi 0, %s49
      %s51 = sphi 0, %s49
      %s52 = sphi 0, %s51
      %s66 = sphi 0, %s52
      %s70 = sphi 0, %s70
      %s72 = sphi 0, %s70
      %s73 = sphi 0, %s72
      %s87 = sphi 0, %s73
      %s93 = sphi 0, %s95
      %s96 = sphi 0, %s93
      %s97 = sphi 0, %s96
      %s113 = sphi 0, %s97
      %s119 = sphi 0, %s121
      %s122 = sphi 0, %s119
      %s123 = sphi 0, %s122
      %s139 = sphi 0, %s123
      %s145 = sphi 0, %s147
      %s148 = sphi 0, %s145
      %s149 = sphi 0, %s148
      %s165 = sphi 0, %s149
    $region4: #{tpu_custom_call.1} parent=1 // loop_header_branch
      %18 = sbr.rel (%p16) target = $region8
    $region5: #{tpu_custom_call.1} parent=1 // loop_body
      %s20 = ssub.s32 %s15, 1
      %s21 = ssub.s32 %s15, 2
      %s22 = sadd.s32 %s15, 1
      %s23 = ssub.s32 %s15, %s22
      %p24 = scmp.eq.s32.totalorder %s23, 0
      %s26 = sadd.s32 %s25, 1
      %s27 = scalar_select %p24, %s25, %s26
      %p30 = pneg %p24
      %p31 = scmp.eq.s32.totalorder %s15, 1
      %p32 = por %p30, %p31
      %p33 = scmp.ne.s32.totalorder %s25, %s28
      %p34 = scmp.eq.s32.totalorder %s15, 0
      %p35 = por %p33, %p34
      %p36 = scmp.ne.s32.totalorder %s25, %s28
      %p37 = scmp.eq.s32.totalorder %s20, 1
      %p38 = por %p36, %p37
      %p39 = scmp.ne.s32.totalorder %s28, %s29
      %p40 = scmp.eq.s32.totalorder %s20, 0
      %p41 = por %p39, %p40
      %p42 = scmp.ne.s32.totalorder %s28, %s29
      %p43 = scmp.eq.s32.totalorder %s21, 1
      %p44 = por %p42, %p43
      %p46 = scmp.ne.s32.totalorder %s29, %s45
      %p47 = scmp.eq.s32.totalorder %s21, 0
      %p48 = por %p46, %p47
      %s50 = sadd.s32 %s49, 1
      %p53 = scmp.eq.s32.totalorder %s15, 1
      %p54 = scmp.ne.s32.totalorder %s49, %s51
      %p55 = scmp.eq.s32.totalorder %s15, 0
      %p56 = por %p54, %p55
      %p57 = scmp.ne.s32.totalorder %s49, %s51
      %p58 = scmp.eq.s32.totalorder %s20, 1
      %p59 = por %p57, %p58
      %p60 = scmp.ne.s32.totalorder %s51, %s52
      %p61 = scmp.eq.s32.totalorder %s20, 0
      %p62 = por %p60, %p61
      %p63 = scmp.ne.s32.totalorder %s51, %s52
      %p64 = scmp.eq.s32.totalorder %s21, 1
      %p65 = por %p63, %p64
      %p67 = scmp.ne.s32.totalorder %s52, %s66
      %p68 = scmp.eq.s32.totalorder %s21, 0
      %p69 = por %p67, %p68
      %s71 = sadd.s32 %s70, 1
      %p74 = scmp.eq.s32.totalorder %s15, 1
      %p75 = scmp.ne.s32.totalorder %s70, %s72
      %p76 = scmp.eq.s32.totalorder %s15, 0
      %p77 = por %p75, %p76
      %p78 = scmp.ne.s32.totalorder %s70, %s72
      %p79 = scmp.eq.s32.totalorder %s20, 1
      %p80 = por %p78, %p79
      %p81 = scmp.ne.s32.totalorder %s72, %s73
      %p82 = scmp.eq.s32.totalorder %s20, 0
      %p83 = por %p81, %p82
      %p84 = scmp.ne.s32.totalorder %s72, %s73
      %p85 = scmp.eq.s32.totalorder %s21, 1
      %p86 = por %p84, %p85
      %p88 = scmp.ne.s32.totalorder %s73, %s87
      %p89 = scmp.eq.s32.totalorder %s21, 0
      %p90 = por %p88, %p89
      %s91 = ssub.s32 %s15, %s22
      %p92 = scmp.eq.s32.totalorder %s91, 0
      %s94 = sadd.s32 %s93, 1
      %s95 = scalar_select %p92, %s93, %s94
      %p98 = pneg %p92
      %p99 = scmp.eq.s32.totalorder %s15, 1
      %p100 = por %p98, %p99
      %p101 = scmp.ne.s32.totalorder %s93, %s96
      %p102 = scmp.eq.s32.totalorder %s15, 0
      %p103 = por %p101, %p102
      %p104 = scmp.ne.s32.totalorder %s93, %s96
      %p105 = scmp.eq.s32.totalorder %s20, 1
      %p106 = por %p104, %p105
      %p107 = scmp.ne.s32.totalorder %s96, %s97
      %p108 = scmp.eq.s32.totalorder %s20, 0
      %p109 = por %p107, %p108
      %p110 = scmp.ne.s32.totalorder %s96, %s97
      %p111 = scmp.eq.s32.totalorder %s21, 1
      %p112 = por %p110, %p111
      %p114 = scmp.ne.s32.totalorder %s97, %s113
      %p115 = scmp.eq.s32.totalorder %s21, 0
      %p116 = por %p114, %p115
      %s117 = ssub.s32 %s15, %s22
      %p118 = scmp.eq.s32.totalorder %s117, 0
      %s120 = sadd.s32 %s119, 1
      %s121 = scalar_select %p118, %s119, %s120
      %p124 = pneg %p118
      %p125 = scmp.eq.s32.totalorder %s15, 1
      %p126 = por %p124, %p125
      %p127 = scmp.ne.s32.totalorder %s119, %s122
      %p128 = scmp.eq.s32.totalorder %s15, 0
      %p129 = por %p127, %p128
      %p130 = scmp.ne.s32.totalorder %s119, %s122
      %p131 = scmp.eq.s32.totalorder %s20, 1
      %p132 = por %p130, %p131
      %p133 = scmp.ne.s32.totalorder %s122, %s123
      %p134 = scmp.eq.s32.totalorder %s20, 0
      %p135 = por %p133, %p134
      %p136 = scmp.ne.s32.totalorder %s122, %s123
      %p137 = scmp.eq.s32.totalorder %s21, 1
      %p138 = por %p136, %p137
      %p140 = scmp.ne.s32.totalorder %s123, %s139
      %p141 = scmp.eq.s32.totalorder %s21, 0
      %p142 = por %p140, %p141
      %s143 = ssub.s32 %s15, %s22
      %p144 = scmp.eq.s32.totalorder %s143, 0
      %s146 = sadd.s32 %s145, 1
      %s147 = scalar_select %p144, %s145, %s146
      %p150 = pneg %p144
      %p151 = scmp.eq.s32.totalorder %s15, 1
      %p152 = por %p150, %p151
      %p153 = scmp.ne.s32.totalorder %s145, %s148
      %p154 = scmp.eq.s32.totalorder %s15, 0
      %p155 = por %p153, %p154
      %p156 = scmp.ne.s32.totalorder %s145, %s148
      %p157 = scmp.eq.s32.totalorder %s20, 1
      %p158 = por %p156, %p157
      %p159 = scmp.ne.s32.totalorder %s148, %s149
      %p160 = scmp.eq.s32.totalorder %s20, 0
      %p161 = por %p159, %p160
      %p162 = scmp.ne.s32.totalorder %s148, %s149
      %p163 = scmp.eq.s32.totalorder %s21, 1
      %p164 = por %p162, %p163
      %p166 = scmp.ne.s32.totalorder %s149, %s165
      %p167 = scmp.eq.s32.totalorder %s21, 0
      %p168 = por %p166, %p167
      %p169 = scmp.le.s32.totalorder 1, %s15
      %p170 = scmp.lt.s32.totalorder %s15, 3
      %p171 = pnand %p169, %p170
      %p172 = pneg %p171
      // Predicated region
      $region9: #{tpu_custom_call.1} parent=5 // pred_check
        _
      $region10: #{tpu_custom_call.1} parent=5 // pred_check_branch
        %174 = sbr.rel (%p171) target = $region12
      $region11: #{tpu_custom_call.1} parent=5 // pred_region
        %s175 = ssub.s32 %s15, 1
        // Predicated region
        $region13: #{tpu_custom_call.1} parent=11 // pred_check
          %p176 = pneg %p62
        $region14: #{tpu_custom_call.1} parent=11 // pred_check_branch
          %178 = sbr.rel (%p176) target = $region16
        $region15: #{tpu_custom_call.1} parent=11 // pred_region
          _
        $region16: #{tpu_custom_call.1} parent=11 // pred_fallthru
          _
        // Predicated region
        $region17: #{tpu_custom_call.1} parent=11 // pred_check
          %p179 = pneg %p83
        $region18: #{tpu_custom_call.1} parent=11 // pred_check_branch
          %181 = sbr.rel (%p179) target = $region20
        $region19: #{tpu_custom_call.1} parent=11 // pred_region
          _
        $region20: #{tpu_custom_call.1} parent=11 // pred_fallthru
          _
      $region12: #{tpu_custom_call.1} parent=5 // pred_fallthru
        _
      %p182 = scmp.lt.s32.totalorder %s15, 2
      // Predicated region
      $region21: #{tpu_custom_call.1} parent=5 // pred_check
        %p183 = pneg %p182
      $region22: #{tpu_custom_call.1} parent=5 // pred_check_branch
        %185 = sbr.rel (%p183) target = $region24
      $region23: #{tpu_custom_call.1} parent=5 // pred_region
        // Predicated region
        $region25: #{tpu_custom_call.1} parent=23 // pred_check
          %p186 = pneg %p35
        $region26: #{tpu_custom_call.1} parent=23 // pred_check_branch
          %188 = sbr.rel (%p186) target = $region28
        $region27: #{tpu_custom_call.1} parent=23 // pred_region
          %p189 = scmp.lt.s32.totalorder %s15, 1
          %s190 = scalar_select %p189, %s15, 1
          %s191 = smul.addr %s190, 3
          %s192 = smul.addr %s191, 2
          %s193 = scalar_lea.vmem %s0, %s192
        $region28: #{tpu_custom_call.1} parent=23 // pred_fallthru
          _
      $region24: #{tpu_custom_call.1} parent=5 // pred_fallthru
        _
      %p194 = scmp.le.s32.totalorder 1, %s15
      %p195 = scmp.lt.s32.totalorder %s15, 3
      %p196 = pnand %p194, %p195
      %p197 = pneg %p196
      // Predicated region
      $region29: #{tpu_custom_call.1} parent=5 // pred_check
        _
      $region30: #{tpu_custom_call.1} parent=5 // pred_check_branch
        %199 = sbr.rel (%p196) target = $region32
      $region31: #{tpu_custom_call.1} parent=5 // pred_region
        %s200 = ssub.s32 %s15, 1
        %p201 = scmp.lt.s32.totalorder %s20, 1
        %s202 = scalar_select %p201, %s20, 1
        %s203 = smul.addr %s202, 3
        %s204 = smul.addr %s203, 2
        %s205 = scalar_lea.vmem %s0, %s204
        %p206 = pneg %p41
        %p207 = pneg %p38
        %p208 = pneg %p62
        %p209 = pneg %p59
        %p210 = pneg %p83
        %p211 = pneg %p80
        %p212 = pneg %p109
        %p213 = pneg %p106
        %s214 = sand.u32 %s96, 1
        %s215 = scalar_lea.sflag [#allocation3], %s214
        %s216 = sand.u32 %s96, 1
        %s217 = smul.addr %s216, 12
        %s218 = scalar_lea.vmem [#allocation2], %s217
        %p219 = pneg %p135
        %p220 = pneg %p132
        %p221 = scmp.lt.s32.totalorder %s20, 1
        %s222 = scalar_select %p221, %s20, 1
        %s223 = smul.addr %s222, 8
        %s224 = scalar_lea.vmem %s4, %s223
        %p225 = pneg %p161
        %p226 = pneg %p158
        %p227 = scmp.lt.s32.totalorder %s20, 1
        %s228 = scalar_select %p227, %s20, 1
        %s229 = smul.addr %s228, 8
        %s230 = scalar_lea.vmem %s5, %s229
        %p231 = scmp.lt.s32.totalorder %s20, 1
        %s232 = scalar_select %p231, %s20, 1
        %s233 = smul.addr %s232, 3
        %s234 = smul.addr %s233, 2
        %s235 = scalar_lea.vmem %s0, %s234
        %p236 = scmp.lt.s32.totalorder %s20, 1
        %s237 = scalar_select %p236, %s20, 1
        %s238 = smul.addr %s237, 8
        %s239 = scalar_lea.vmem %s4, %s238
        %p240 = scmp.lt.s32.totalorder %s20, 1
        %s241 = scalar_select %p240, %s20, 1
        %s242 = smul.addr %s241, 8
        %s243 = scalar_lea.vmem %s5, %s242
        %v245 = vld [vmem:[%s235] sm:$0x3f]
        %v246 = vld [vmem:[%s1] sm:$0xf]
        %v247 = vld [vmem:[%s1 + $0x4] sm:$0xf]
        %v248 = vld [vmem:[%s1 + $0x8] sm:$0xf]
        %v249 = vld [vmem:[%s1 + $0xc] sm:$0xf]
        %v250 = vld [vmem:[%s1 + $0x10] sm:$0xf]
        %v251 = vld [vmem:[%s1 + $0x14] sm:$0xf]
        %v252 = vld [vmem:[%s1 + $0x18] sm:$0xf]
        %v253 = vld [vmem:[%s1 + $0x1c] sm:$0xf]
        %v254 = vld [vmem:[%s1 + $0x20] sm:$0xf]
        %v256 = vcombine.high %v245, %v245
        %v258 = vunpack.c.l.s4 1983009808
        %v259 = vunpack.c.0.s8 %v258
        %v260 = vlaneseq
        %v261 = vshrl.u32 %v260, 7
        %v262 = vsub.s32 %v259, %v261
        %v263 = vrot.slane %v245, %v262
        %v265 = vunpack.c.l.s4 1983009808
        %v266 = vunpack.c.0.s8 %v265
        %v267 = vlaneseq
        %v268 = vshrl.u32 %v267, 7
        %v269 = vsub.s32 %v266, %v268
        %v270 = vrot.slane %v256, %v269
        %v271 = vcombine.high %v263, %v263
        %272 = vrot.lane.b32.xlu0 %v263, 127
        %v273 = vpop.permute.xlu0 %272
        %274 = vrot.lane.b32.xlu0 %v271, 127
        %v275 = vpop.permute.xlu0 %274
        %276 = vrot.lane.b32.xlu0 %v270, 127
        %v277 = vpop.permute.xlu0 %276
        %vm278 = vcmask 1039360
        %v279 = vsel %vm278, %v273, %v275
        %v280 = vsel %vm278, %v275, %v277
        %vm281 = vcmask 31744
        %v283 = vsel %vm281, %v247, 0
        %vm285 = vcmask 1041408
        %v287 = vsel %vm285, %v279, 0
        %v290 = vsel %vm285, %v280, 0
        %v293 = vsel %vm285, %v277, 0
        %295 = vmatprep.subr.bf16.mxu0 %v290
        %296 = vmatpush1.bf16.msra.mxu0 %v287
        %297 = vmatprep.subr.bf16.mxu0 0
        %298 = vmatpush1.bf16.msra.mxu0 0
        %299 = vmatprep.subr.bf16.mxu0 0
        %300 = vmatpush1.bf16.msra.mxu0 0
        %301 = vmatprep.subr.bf16.mxu0 0
        %302 = vmatpush1.bf16.msra.mxu0 0
        %303 = vmatprep.subr.bf16.mxu0 0
        %304 = vmatpush1.bf16.msra.mxu0 0
        %305 = vmatprep.subr.bf16.mxu0 0
        %306 = vmatpush1.bf16.msra.mxu0 0
        %307 = vmatprep.subr.bf16.mxu0 0
        %308 = vmatpush1.bf16.msra.mxu0 0
        %309 = vmatprep.subr.bf16.mxu0 0
        %310 = vmatpush1.bf16.msra.mxu0 0
        %311 = vmatprep.subr.bf16.mxu0 0
        %312 = vmatpush1.bf16.msra.mxu0 0
        %313 = vmatprep.subr.bf16.mxu0 0
        %314 = vmatpush1.bf16.msra.mxu0 0
        %315 = vmatprep.subr.bf16.mxu0 0
        %316 = vmatpush1.bf16.msra.mxu0 0
        %317 = vmatprep.subr.bf16.mxu0 0
        %318 = vmatpush1.bf16.msra.mxu0 0
        %319 = vmatprep.subr.bf16.mxu0 0
        %320 = vmatpush1.bf16.msra.mxu0 0
        %321 = vmatprep.subr.bf16.mxu0 0
        %322 = vmatpush1.bf16.msra.mxu0 0
        %323 = vmatprep.subr.bf16.mxu0 0
        %324 = vmatpush1.bf16.msra.mxu0 0
        %325 = vmatprep.subr.bf16.mxu0 0
        %326 = vmatpush1.bf16.msra.mxu0 0
        %327 = vmatprep.mubr.bf16.mxu0 0
        %328 = vmatmul.mubr.bf16.gmra.mrb[0].mxu0 %v283
        %v329 = vpop.f32.mrb[0].mxu0
        %v330 = vadd.f32 0.0, %v329
        %v331 = vpop.f32.mrb[0].mxu0
        %v332 = vadd.f32 0.0, %v331
        %v333 = vpop.f32.mrb[0].mxu0
        %v334 = vpop.f32.mrb[0].mxu0
        %335 = vdwg.mxu0
        %336 = vmatprep.subr.bf16.mxu0 0
        %337 = vmatpush1.bf16.msra.mxu0 %v293
        %338 = vmatprep.subr.bf16.mxu0 0
        %339 = vmatpush1.bf16.msra.mxu0 0
        %340 = vmatprep.subr.bf16.mxu0 0
        %341 = vmatpush1.bf16.msra.mxu0 0
        %342 = vmatprep.subr.bf16.mxu0 0
        %343 = vmatpush1.bf16.msra.mxu0 0
        %344 = vmatprep.subr.bf16.mxu0 0
        %345 = vmatpush1.bf16.msra.mxu0 0
        %346 = vmatprep.subr.bf16.mxu0 0
        %347 = vmatpush1.bf16.msra.mxu0 0
        %348 = vmatprep.subr.bf16.mxu0 0
        %349 = vmatpush1.bf16.msra.mxu0 0
        %350 = vmatprep.subr.bf16.mxu0 0
        %351 = vmatpush1.bf16.msra.mxu0 0
        %352 = vmatprep.subr.bf16.mxu0 0
        %353 = vmatpush1.bf16.msra.mxu0 0
        %354 = vmatprep.subr.bf16.mxu0 0
        %355 = vmatpush1.bf16.msra.mxu0 0
        %356 = vmatprep.subr.bf16.mxu0 0
        %357 = vmatpush1.bf16.msra.mxu0 0
        %358 = vmatprep.subr.bf16.mxu0 0
        %359 = vmatpush1.bf16.msra.mxu0 0
        %360 = vmatprep.subr.bf16.mxu0 0
        %361 = vmatpush1.bf16.msra.mxu0 0
        %362 = vmatprep.subr.bf16.mxu0 0
        %363 = vmatpush1.bf16.msra.mxu0 0
        %364 = vmatprep.subr.bf16.mxu0 0
        %365 = vmatpush1.bf16.msra.mxu0 0
        %366 = vmatprep.subr.bf16.mxu0 0
        %367 = vmatpush1.bf16.msra.mxu0 0
        %368 = vmatprep.mubr.bf16.mxu0 0
        %369 = vmatmul.mubr.bf16.gmra.mrb[0].mxu0 %v283
        %v370 = vpop.f32.mrb[0].mxu0
        %v371 = vadd.f32 0.0, %v370
        %v372 = vpop.f32.mrb[0].mxu0
        %v373 = vpop.f32.mrb[0].mxu0
        %v374 = vpop.f32.mrb[0].mxu0
        %375 = vdwg.mxu0
        %v377 = vsel %vm281, %v246, 0
        %v380 = vsel %vm285, %v263, 0
        %v383 = vsel %vm285, %v271, 0
        %v386 = vsel %vm285, %v270, 0
        %388 = vmatprep.subr.bf16.mxu0 %v383
        %389 = vmatpush1.bf16.msra.mxu0 %v380
        %390 = vmatprep.subr.bf16.mxu0 0
        %391 = vmatpush1.bf16.msra.mxu0 0
        %392 = vmatprep.subr.bf16.mxu0 0
        %393 = vmatpush1.bf16.msra.mxu0 0
        %394 = vmatprep.subr.bf16.mxu0 0
        %395 = vmatpush1.bf16.msra.mxu0 0
        %396 = vmatprep.subr.bf16.mxu0 0
        %397 = vmatpush1.bf16.msra.mxu0 0
        %398 = vmatprep.subr.bf16.mxu0 0
        %399 = vmatpush1.bf16.msra.mxu0 0
        %400 = vmatprep.subr.bf16.mxu0 0
        %401 = vmatpush1.bf16.msra.mxu0 0
        %402 = vmatprep.subr.bf16.mxu0 0
        %403 = vmatpush1.bf16.msra.mxu0 0
        %404 = vmatprep.subr.bf16.mxu0 0
        %405 = vmatpush1.bf16.msra.mxu0 0
        %406 = vmatprep.subr.bf16.mxu0 0
        %407 = vmatpush1.bf16.msra.mxu0 0
        %408 = vmatprep.subr.bf16.mxu0 0
        %409 = vmatpush1.bf16.msra.mxu0 0
        %410 = vmatprep.subr.bf16.mxu0 0
        %411 = vmatpush1.bf16.msra.mxu0 0
        %412 = vmatprep.subr.bf16.mxu0 0
        %413 = vmatpush1.bf16.msra.mxu0 0
        %414 = vmatprep.subr.bf16.mxu0 0
        %415 = vmatpush1.bf16.msra.mxu0 0
        %416 = vmatprep.subr.bf16.mxu0 0
        %417 = vmatpush1.bf16.msra.mxu0 0
        %418 = vmatprep.subr.bf16.mxu0 0
        %419 = vmatpush1.bf16.msra.mxu0 0
        %420 = vmatprep.mubr.bf16.mxu0 0
        %421 = vmatmul.mubr.bf16.gmra.mrb[0].mxu0 %v377
        %v422 = vpop.f32.mrb[0].mxu0
        %v423 = vadd.f32 %v330, %v422
        %v424 = vpop.f32.mrb[0].mxu0
        %v425 = vadd.f32 %v332, %v424
        %v426 = vpop.f32.mrb[0].mxu0
        %v427 = vpop.f32.mrb[0].mxu0
        %428 = vdwg.mxu0
        %429 = vmatprep.subr.bf16.mxu0 0
        %430 = vmatpush1.bf16.msra.mxu0 %v386
        %431 = vmatprep.subr.bf16.mxu0 0
        %432 = vmatpush1.bf16.msra.mxu0 0
        %433 = vmatprep.subr.bf16.mxu0 0
        %434 = vmatpush1.bf16.msra.mxu0 0
        %435 = vmatprep.subr.bf16.mxu0 0
        %436 = vmatpush1.bf16.msra.mxu0 0
        %437 = vmatprep.subr.bf16.mxu0 0
        %438 = vmatpush1.bf16.msra.mxu0 0
        %439 = vmatprep.subr.bf16.mxu0 0
        %440 = vmatpush1.bf16.msra.mxu0 0
        %441 = vmatprep.subr.bf16.mxu0 0
        %442 = vmatpush1.bf16.msra.mxu0 0
        %443 = vmatprep.subr.bf16.mxu0 0
        %444 = vmatpush1.bf16.msra.mxu0 0
        %445 = vmatprep.subr.bf16.mxu0 0
        %446 = vmatpush1.bf16.msra.mxu0 0
        %447 = vmatprep.subr.bf16.mxu0 0
        %448 = vmatpush1.bf16.msra.mxu0 0
        %449 = vmatprep.subr.bf16.mxu0 0
        %450 = vmatpush1.bf16.msra.mxu0 0
        %451 = vmatprep.subr.bf16.mxu0 0
        %452 = vmatpush1.bf16.msra.mxu0 0
        %453 = vmatprep.subr.bf16.mxu0 0
        %454 = vmatpush1.bf16.msra.mxu0 0
        %455 = vmatprep.subr.bf16.mxu0 0
        %456 = vmatpush1.bf16.msra.mxu0 0
        %457 = vmatprep.subr.bf16.mxu0 0
        %458 = vmatpush1.bf16.msra.mxu0 0
        %459 = vmatprep.subr.bf16.mxu0 0
        %460 = vmatpush1.bf16.msra.mxu0 0
        %461 = vmatprep.mubr.bf16.mxu0 0
        %462 = vmatmul.mubr.bf16.gmra.mrb[0].mxu0 %v377
        %v463 = vpop.f32.mrb[0].mxu0
        %v464 = vadd.f32 %v371, %v463
        %v465 = vpop.f32.mrb[0].mxu0
        %v466 = vpop.f32.mrb[0].mxu0
        %v467 = vpop.f32.mrb[0].mxu0
        %468 = vdwg.mxu0
        %469 = vrot.lane.b32.xlu0 %v263, 126
        %v470 = vpop.permute.xlu0 %469
        %471 = vrot.lane.b32.xlu0 %v271, 126
        %v472 = vpop.permute.xlu0 %471
        %473 = vrot.lane.b32.xlu0 %v270, 126
        %v474 = vpop.permute.xlu0 %473
        %vm475 = vcmask 1031168
        %v476 = vsel %vm475, %v470, %v472
        %v477 = vsel %vm475, %v472, %v474
        %v479 = vsel %vm281, %v248, 0
        %v482 = vsel %vm285, %v476, 0
        %v485 = vsel %vm285, %v477, 0
        %v488 = vsel %vm285, %v474, 0
        %490 = vmatprep.subr.bf16.mxu0 %v485
        %491 = vmatpush1.bf16.msra.mxu0 %v482
        %492 = vmatprep.subr.bf16.mxu0 0
        %493 = vmatpush1.bf16.msra.mxu0 0
        %494 = vmatprep.subr.bf16.mxu0 0
        %495 = vmatpush1.bf16.msra.mxu0 0
        %496 = vmatprep.subr.bf16.mxu0 0
        %497 = vmatpush1.bf16.msra.mxu0 0
        %498 = vmatprep.subr.bf16.mxu0 0
        %499 = vmatpush1.bf16.msra.mxu0 0
        %500 = vmatprep.subr.bf16.mxu0 0
        %501 = vmatpush1.bf16.msra.mxu0 0
        %502 = vmatprep.subr.bf16.mxu0 0
        %503 = vmatpush1.bf16.msra.mxu0 0
        %504 = vmatprep.subr.bf16.mxu0 0
        %505 = vmatpush1.bf16.msra.mxu0 0
        %506 = vmatprep.subr.bf16.mxu0 0
        %507 = vmatpush1.bf16.msra.mxu0 0
        %508 = vmatprep.subr.bf16.mxu0 0
        %509 = vmatpush1.bf16.msra.mxu0 0
        %510 = vmatprep.subr.bf16.mxu0 0
        %511 = vmatpush1.bf16.msra.mxu0 0
        %512 = vmatprep.subr.bf16.mxu0 0
        %513 = vmatpush1.bf16.msra.mxu0 0
        %514 = vmatprep.subr.bf16.mxu0 0
        %515 = vmatpush1.bf16.msra.mxu0 0
        %516 = vmatprep.subr.bf16.mxu0 0
        %517 = vmatpush1.bf16.msra.mxu0 0
        %518 = vmatprep.subr.bf16.mxu0 0
        %519 = vmatpush1.bf16.msra.mxu0 0
        %520 = vmatprep.subr.bf16.mxu0 0
        %521 = vmatpush1.bf16.msra.mxu0 0
        %522 = vmatprep.mubr.bf16.mxu0 0
        %523 = vmatmul.mubr.bf16.gmra.mrb[0].mxu0 %v479
        %v524 = vpop.f32.mrb[0].mxu0
        %v525 = vadd.f32 0.0, %v524
        %v526 = vpop.f32.mrb[0].mxu0
        %v527 = vadd.f32 0.0, %v526
        %v528 = vpop.f32.mrb[0].mxu0
        %v529 = vpop.f32.mrb[0].mxu0
        %530 = vdwg.mxu0
        %531 = vmatprep.subr.bf16.mxu0 0
        %532 = vmatpush1.bf16.msra.mxu0 %v488
        %533 = vmatprep.subr.bf16.mxu0 0
        %534 = vmatpush1.bf16.msra.mxu0 0
        %535 = vmatprep.subr.bf16.mxu0 0
        %536 = vmatpush1.bf16.msra.mxu0 0
        %537 = vmatprep.subr.bf16.mxu0 0
        %538 = vmatpush1.bf16.msra.mxu0 0
        %539 = vmatprep.subr.bf16.mxu0 0
        %540 = vmatpush1.bf16.msra.mxu0 0
        %541 = vmatprep.subr.bf16.mxu0 0
        %542 = vmatpush1.bf16.msra.mxu0 0
        %543 = vmatprep.subr.bf16.mxu0 0
        %544 = vmatpush1.bf16.msra.mxu0 0
        %545 = vmatprep.subr.bf16.mxu0 0
        %546 = vmatpush1.bf16.msra.mxu0 0
        %547 = vmatprep.subr.bf16.mxu0 0
        %548 = vmatpush1.bf16.msra.mxu0 0
        %549 = vmatprep.subr.bf16.mxu0 0
        %550 = vmatpush1.bf16.msra.mxu0 0
        %551 = vmatprep.subr.bf16.mxu0 0
        %552 = vmatpush1.bf16.msra.mxu0 0
        %553 = vmatprep.subr.bf16.mxu0 0
        %554 = vmatpush1.bf16.msra.mxu0 0
        %555 = vmatprep.subr.bf16.mxu0 0
        %556 = vmatpush1.bf16.msra.mxu0 0
        %557 = vmatprep.subr.bf16.mxu0 0
        %558 = vmatpush1.bf16.msra.mxu0 0
        %559 = vmatprep.subr.bf16.mxu0 0
        %560 = vmatpush1.bf16.msra.mxu0 0
        %561 = vmatprep.subr.bf16.mxu0 0
        %562 = vmatpush1.bf16.msra.mxu0 0
        %563 = vmatprep.mubr.bf16.mxu0 0
        %564 = vmatmul.mubr.bf16.gmra.mrb[0].mxu0 %v479
        %v565 = vpop.f32.mrb[0].mxu0
        %v566 = vadd.f32 0.0, %v565
        %v567 = vpop.f32.mrb[0].mxu0
        %v568 = vpop.f32.mrb[0].mxu0
        %v569 = vpop.f32.mrb[0].mxu0
        %570 = vdwg.mxu0
        %v571 = vadd.f32 %v423, %v525
        %v572 = vadd.f32 %v425, %v527
        %v573 = vadd.f32 %v464, %v566
        %574 = vrot.lane.b32.xlu0 %v263, 110
        %v575 = vpop.permute.xlu0 %574
        %576 = vrot.lane.b32.xlu0 %v271, 110
        %v577 = vpop.permute.xlu0 %576
        %578 = vrot.lane.b32.xlu0 %v270, 110
        %v579 = vpop.permute.xlu0 %578
        %vm580 = vcmask 900096
        %v581 = vsel %vm580, %v575, %v577
        %v582 = vsel %vm580, %v577, %v579
        %v584 = vsel %vm281, %v249, 0
        %v587 = vsel %vm285, %v581, 0
        %v590 = vsel %vm285, %v582, 0
        %v593 = vsel %vm285, %v579, 0
        %595 = vmatprep.subr.bf16.mxu0 %v590
        %596 = vmatpush1.bf16.msra.mxu0 %v587
        %597 = vmatprep.subr.bf16.mxu0 0
        %598 = vmatpush1.bf16.msra.mxu0 0
        %599 = vmatprep.subr.bf16.mxu0 0
        %600 = vmatpush1.bf16.msra.mxu0 0
        %601 = vmatprep.subr.bf16.mxu0 0
        %602 = vmatpush1.bf16.msra.mxu0 0
        %603 = vmatprep.subr.bf16.mxu0 0
        %604 = vmatpush1.bf16.msra.mxu0 0
        %605 = vmatprep.subr.bf16.mxu0 0
        %606 = vmatpush1.bf16.msra.mxu0 0
        %607 = vmatprep.subr.bf16.mxu0 0
        %608 = vmatpush1.bf16.msra.mxu0 0
        %609 = vmatprep.subr.bf16.mxu0 0
        %610 = vmatpush1.bf16.msra.mxu0 0
        %611 = vmatprep.subr.bf16.mxu0 0
        %612 = vmatpush1.bf16.msra.mxu0 0
        %613 = vmatprep.subr.bf16.mxu0 0
        %614 = vmatpush1.bf16.msra.mxu0 0
        %615 = vmatprep.subr.bf16.mxu0 0
        %616 = vmatpush1.bf16.msra.mxu0 0
        %617 = vmatprep.subr.bf16.mxu0 0
        %618 = vmatpush1.bf16.msra.mxu0 0
        %619 = vmatprep.subr.bf16.mxu0 0
        %620 = vmatpush1.bf16.msra.mxu0 0
        %621 = vmatprep.subr.bf16.mxu0 0
        %622 = vmatpush1.bf16.msra.mxu0 0
        %623 = vmatprep.subr.bf16.mxu0 0
        %624 = vmatpush1.bf16.msra.mxu0 0
        %625 = vmatprep.subr.bf16.mxu0 0
        %626 = vmatpush1.bf16.msra.mxu0 0
        %627 = vmatprep.mubr.bf16.mxu0 0
        %628 = vmatmul.mubr.bf16.gmra.mrb[0].mxu0 %v584
        %v629 = vpop.f32.mrb[0].mxu0
        %v630 = vadd.f32 0.0, %v629
        %v631 = vpop.f32.mrb[0].mxu0
        %v632 = vadd.f32 0.0, %v631
        %v633 = vpop.f32.mrb[0].mxu0
        %v634 = vpop.f32.mrb[0].mxu0
        %635 = vdwg.mxu0
        %636 = vmatprep.subr.bf16.mxu0 0
        %637 = vmatpush1.bf16.msra.mxu0 %v593
        %638 = vmatprep.subr.bf16.mxu0 0
        %639 = vmatpush1.bf16.msra.mxu0 0
        %640 = vmatprep.subr.bf16.mxu0 0
        %641 = vmatpush1.bf16.msra.mxu0 0
        %642 = vmatprep.subr.bf16.mxu0 0
        %643 = vmatpush1.bf16.msra.mxu0 0
        %644 = vmatprep.subr.bf16.mxu0 0
        %645 = vmatpush1.bf16.msra.mxu0 0
        %646 = vmatprep.subr.bf16.mxu0 0
        %647 = vmatpush1.bf16.msra.mxu0 0
        %648 = vmatprep.subr.bf16.mxu0 0
        %649 = vmatpush1.bf16.msra.mxu0 0
        %650 = vmatprep.subr.bf16.mxu0 0
        %651 = vmatpush1.bf16.msra.mxu0 0
        %652 = vmatprep.subr.bf16.mxu0 0
        %653 = vmatpush1.bf16.msra.mxu0 0
        %654 = vmatprep.subr.bf16.mxu0 0
        %655 = vmatpush1.bf16.msra.mxu0 0
        %656 = vmatprep.subr.bf16.mxu0 0
        %657 = vmatpush1.bf16.msra.mxu0 0
        %658 = vmatprep.subr.bf16.mxu0 0
        %659 = vmatpush1.bf16.msra.mxu0 0
        %660 = vmatprep.subr.bf16.mxu0 0
        %661 = vmatpush1.bf16.msra.mxu0 0
        %662 = vmatprep.subr.bf16.mxu0 0
        %663 = vmatpush1.bf16.msra.mxu0 0
        %664 = vmatprep.subr.bf16.mxu0 0
        %665 = vmatpush1.bf16.msra.mxu0 0
        %666 = vmatprep.subr.bf16.mxu0 0
        %667 = vmatpush1.bf16.msra.mxu0 0
        %668 = vmatprep.mubr.bf16.mxu0 0
        %669 = vmatmul.mubr.bf16.gmra.mrb[0].mxu0 %v584
        %v670 = vpop.f32.mrb[0].mxu0
        %v671 = vadd.f32 0.0, %v670
        %v672 = vpop.f32.mrb[0].mxu0
        %v673 = vpop.f32.mrb[0].mxu0
        %v674 = vpop.f32.mrb[0].mxu0
        %675 = vdwg.mxu0
        %v676 = vadd.f32 %v571, %v630
        %v677 = vadd.f32 %v572, %v632
        %v678 = vadd.f32 %v573, %v671
        %679 = vrot.lane.b32.xlu0 %v263, 109
        %v680 = vpop.permute.xlu0 %679
        %681 = vrot.lane.b32.xlu0 %v271, 109
        %v682 = vpop.permute.xlu0 %681
        %683 = vrot.lane.b32.xlu0 %v270, 109
        %v684 = vpop.permute.xlu0 %683
        %vm685 = vcmask 891904
        %v686 = vsel %vm685, %v680, %v682
        %v687 = vsel %vm685, %v682, %v684
        %v689 = vsel %vm281, %v250, 0
        %v692 = vsel %vm285, %v686, 0
        %v695 = vsel %vm285, %v687, 0
        %v698 = vsel %vm285, %v684, 0
        %700 = vmatprep.subr.bf16.mxu0 %v695
        %701 = vmatpush1.bf16.msra.mxu0 %v692
        %702 = vmatprep.subr.bf16.mxu0 0
        %703 = vmatpush1.bf16.msra.mxu0 0
        %704 = vmatprep.subr.bf16.mxu0 0
        %705 = vmatpush1.bf16.msra.mxu0 0
        %706 = vmatprep.subr.bf16.mxu0 0
        %707 = vmatpush1.bf16.msra.mxu0 0
        %708 = vmatprep.subr.bf16.mxu0 0
        %709 = vmatpush1.bf16.msra.mxu0 0
        %710 = vmatprep.subr.bf16.mxu0 0
        %711 = vmatpush1.bf16.msra.mxu0 0
        %712 = vmatprep.subr.bf16.mxu0 0
        %713 = vmatpush1.bf16.msra.mxu0 0
        %714 = vmatprep.subr.bf16.mxu0 0
        %715 = vmatpush1.bf16.msra.mxu0 0
        %716 = vmatprep.subr.bf16.mxu0 0
        %717 = vmatpush1.bf16.msra.mxu0 0
        %718 = vmatprep.subr.bf16.mxu0 0
        %719 = vmatpush1.bf16.msra.mxu0 0
        %720 = vmatprep.subr.bf16.mxu0 0
        %721 = vmatpush1.bf16.msra.mxu0 0
        %722 = vmatprep.subr.bf16.mxu0 0
        %723 = vmatpush1.bf16.msra.mxu0 0
        %724 = vmatprep.subr.bf16.mxu0 0
        %725 = vmatpush1.bf16.msra.mxu0 0
        %726 = vmatprep.subr.bf16.mxu0 0
        %727 = vmatpush1.bf16.msra.mxu0 0
        %728 = vmatprep.subr.bf16.mxu0 0
        %729 = vmatpush1.bf16.msra.mxu0 0
        %730 = vmatprep.subr.bf16.mxu0 0
        %731 = vmatpush1.bf16.msra.mxu0 0
        %732 = vmatprep.mubr.bf16.mxu0 0
        %733 = vmatmul.mubr.bf16.gmra.mrb[0].mxu0 %v689
        %v734 = vpop.f32.mrb[0].mxu0
        %v735 = vadd.f32 0.0, %v734
        %v736 = vpop.f32.mrb[0].mxu0
        %v737 = vadd.f32 0.0, %v736
        %v738 = vpop.f32.mrb[0].mxu0
        %v739 = vpop.f32.mrb[0].mxu0
        %740 = vdwg.mxu0
        %741 = vmatprep.subr.bf16.mxu0 0
        %742 = vmatpush1.bf16.msra.mxu0 %v698
        %743 = vmatprep.subr.bf16.mxu0 0
        %744 = vmatpush1.bf16.msra.mxu0 0
        %745 = vmatprep.subr.bf16.mxu0 0
        %746 = vmatpush1.bf16.msra.mxu0 0
        %747 = vmatprep.subr.bf16.mxu0 0
        %748 = vmatpush1.bf16.msra.mxu0 0
        %749 = vmatprep.subr.bf16.mxu0 0
        %750 = vmatpush1.bf16.msra.mxu0 0
        %751 = vmatprep.subr.bf16.mxu0 0
        %752 = vmatpush1.bf16.msra.mxu0 0
        %753 = vmatprep.subr.bf16.mxu0 0
        %754 = vmatpush1.bf16.msra.mxu0 0
        %755 = vmatprep.subr.bf16.mxu0 0
        %756 = vmatpush1.bf16.msra.mxu0 0
        %757 = vmatprep.subr.bf16.mxu0 0
        %758 = vmatpush1.bf16.msra.mxu0 0
        %759 = vmatprep.subr.bf16.mxu0 0
        %760 = vmatpush1.bf16.msra.mxu0 0
        %761 = vmatprep.subr.bf16.mxu0 0
        %762 = vmatpush1.bf16.msra.mxu0 0
        %763 = vmatprep.subr.bf16.mxu0 0
        %764 = vmatpush1.bf16.msra.mxu0 0
        %765 = vmatprep.subr.bf16.mxu0 0
        %766 = vmatpush1.bf16.msra.mxu0 0
        %767 = vmatprep.subr.bf16.mxu0 0
        %768 = vmatpush1.bf16.msra.mxu0 0
        %769 = vmatprep.subr.bf16.mxu0 0
        %770 = vmatpush1.bf16.msra.mxu0 0
        %771 = vmatprep.subr.bf16.mxu0 0
        %772 = vmatpush1.bf16.msra.mxu0 0
        %773 = vmatprep.mubr.bf16.mxu0 0
        %774 = vmatmul.mubr.bf16.gmra.mrb[0].mxu0 %v689
        %v775 = vpop.f32.mrb[0].mxu0
        %v776 = vadd.f32 0.0, %v775
        %v777 = vpop.f32.mrb[0].mxu0
        %v778 = vpop.f32.mrb[0].mxu0
        %v779 = vpop.f32.mrb[0].mxu0
        %780 = vdwg.mxu0
        %v781 = vadd.f32 %v676, %v735
        %v782 = vadd.f32 %v677, %v737
        %v783 = vadd.f32 %v678, %v776
        %784 = vrot.lane.b32.xlu0 %v263, 108
        %v785 = vpop.permute.xlu0 %784
        %786 = vrot.lane.b32.xlu0 %v271, 108
        %v787 = vpop.permute.xlu0 %786
        %788 = vrot.lane.b32.xlu0 %v270, 108
        %v789 = vpop.permute.xlu0 %788
        %vm790 = vcmask 883712
        %v791 = vsel %vm790, %v785, %v787
        %v792 = vsel %vm790, %v787, %v789
        %v794 = vsel %vm281, %v251, 0
        %v797 = vsel %vm285, %v791, 0
        %v800 = vsel %vm285, %v792, 0
        %v803 = vsel %vm285, %v789, 0
        %805 = vmatprep.subr.bf16.mxu0 %v800
        %806 = vmatpush1.bf16.msra.mxu0 %v797
        %807 = vmatprep.subr.bf16.mxu0 0
        %808 = vmatpush1.bf16.msra.mxu0 0
        %809 = vmatprep.subr.bf16.mxu0 0
        %810 = vmatpush1.bf16.msra.mxu0 0
        %811 = vmatprep.subr.bf16.mxu0 0
        %812 = vmatpush1.bf16.msra.mxu0 0
        %813 = vmatprep.subr.bf16.mxu0 0
        %814 = vmatpush1.bf16.msra.mxu0 0
        %815 = vmatprep.subr.bf16.mxu0 0
        %816 = vmatpush1.bf16.msra.mxu0 0
        %817 = vmatprep.subr.bf16.mxu0 0
        %818 = vmatpush1.bf16.msra.mxu0 0
        %819 = vmatprep.subr.bf16.mxu0 0
        %820 = vmatpush1.bf16.msra.mxu0 0
        %821 = vmatprep.subr.bf16.mxu0 0
        %822 = vmatpush1.bf16.msra.mxu0 0
        %823 = vmatprep.subr.bf16.mxu0 0
        %824 = vmatpush1.bf16.msra.mxu0 0
        %825 = vmatprep.subr.bf16.mxu0 0
        %826 = vmatpush1.bf16.msra.mxu0 0
        %827 = vmatprep.subr.bf16.mxu0 0
        %828 = vmatpush1.bf16.msra.mxu0 0
        %829 = vmatprep.subr.bf16.mxu0 0
        %830 = vmatpush1.bf16.msra.mxu0 0
        %831 = vmatprep.subr.bf16.mxu0 0
        %832 = vmatpush1.bf16.msra.mxu0 0
        %833 = vmatprep.subr.bf16.mxu0 0
        %834 = vmatpush1.bf16.msra.mxu0 0
        %835 = vmatprep.subr.bf16.mxu0 0
        %836 = vmatpush1.bf16.msra.mxu0 0
        %837 = vmatprep.mubr.bf16.mxu0 0
        %838 = vmatmul.mubr.bf16.gmra.mrb[0].mxu0 %v794
        %v839 = vpop.f32.mrb[0].mxu0
        %v840 = vadd.f32 0.0, %v839
        %v841 = vpop.f32.mrb[0].mxu0
        %v842 = vadd.f32 0.0, %v841
        %v843 = vpop.f32.mrb[0].mxu0
        %v844 = vpop.f32.mrb[0].mxu0
        %845 = vdwg.mxu0
        %846 = vmatprep.subr.bf16.mxu0 0
        %847 = vmatpush1.bf16.msra.mxu0 %v803
        %848 = vmatprep.subr.bf16.mxu0 0
        %849 = vmatpush1.bf16.msra.mxu0 0
        %850 = vmatprep.subr.bf16.mxu0 0
        %851 = vmatpush1.bf16.msra.mxu0 0
        %852 = vmatprep.subr.bf16.mxu0 0
        %853 = vmatpush1.bf16.msra.mxu0 0
        %854 = vmatprep.subr.bf16.mxu0 0
        %855 = vmatpush1.bf16.msra.mxu0 0
        %856 = vmatprep.subr.bf16.mxu0 0
        %857 = vmatpush1.bf16.msra.mxu0 0
        %858 = vmatprep.subr.bf16.mxu0 0
        %859 = vmatpush1.bf16.msra.mxu0 0
        %860 = vmatprep.subr.bf16.mxu0 0
        %861 = vmatpush1.bf16.msra.mxu0 0
        %862 = vmatprep.subr.bf16.mxu0 0
        %863 = vmatpush1.bf16.msra.mxu0 0
        %864 = vmatprep.subr.bf16.mxu0 0
        %865 = vmatpush1.bf16.msra.mxu0 0
        %866 = vmatprep.subr.bf16.mxu0 0
        %867 = vmatpush1.bf16.msra.mxu0 0
        %868 = vmatprep.subr.bf16.mxu0 0
        %869 = vmatpush1.bf16.msra.mxu0 0
        %870 = vmatprep.subr.bf16.mxu0 0
        %871 = vmatpush1.bf16.msra.mxu0 0
        %872 = vmatprep.subr.bf16.mxu0 0
        %873 = vmatpush1.bf16.msra.mxu0 0
        %874 = vmatprep.subr.bf16.mxu0 0
        %875 = vmatpush1.bf16.msra.mxu0 0
        %876 = vmatprep.subr.bf16.mxu0 0
        %877 = vmatpush1.bf16.msra.mxu0 0
        %878 = vmatprep.mubr.bf16.mxu0 0
        %879 = vmatmul.mubr.bf16.gmra.mrb[0].mxu0 %v794
        %v880 = vpop.f32.mrb[0].mxu0
        %v881 = vadd.f32 0.0, %v880
        %v882 = vpop.f32.mrb[0].mxu0
        %v883 = vpop.f32.mrb[0].mxu0
        %v884 = vpop.f32.mrb[0].mxu0
        %885 = vdwg.mxu0
        %v886 = vadd.f32 %v781, %v840
        %v887 = vadd.f32 %v782, %v842
        %v888 = vadd.f32 %v783, %v881
        %889 = vrot.lane.b32.xlu0 %v263, 92
        %v890 = vpop.permute.xlu0 %889
        %891 = vrot.lane.b32.xlu0 %v271, 92
        %v892 = vpop.permute.xlu0 %891
        %893 = vrot.lane.b32.xlu0 %v270, 92
        %v894 = vpop.permute.xlu0 %893
        %vm895 = vcmask 752640
        %v896 = vsel %vm895, %v890, %v892
        %v897 = vsel %vm895, %v892, %v894
        %v899 = vsel %vm281, %v252, 0
        %v902 = vsel %vm285, %v896, 0
        %v905 = vsel %vm285, %v897, 0
        %v908 = vsel %vm285, %v894, 0
        %910 = vmatprep.subr.bf16.mxu0 %v905
        %911 = vmatpush1.bf16.msra.mxu0 %v902
        %912 = vmatprep.subr.bf16.mxu0 0
        %913 = vmatpush1.bf16.msra.mxu0 0
        %914 = vmatprep.subr.bf16.mxu0 0
        %915 = vmatpush1.bf16.msra.mxu0 0
        %916 = vmatprep.subr.bf16.mxu0 0
        %917 = vmatpush1.bf16.msra.mxu0 0
        %918 = vmatprep.subr.bf16.mxu0 0
        %919 = vmatpush1.bf16.msra.mxu0 0
        %920 = vmatprep.subr.bf16.mxu0 0
        %921 = vmatpush1.bf16.msra.mxu0 0
        %922 = vmatprep.subr.bf16.mxu0 0
        %923 = vmatpush1.bf16.msra.mxu0 0
        %924 = vmatprep.subr.bf16.mxu0 0
        %925 = vmatpush1.bf16.msra.mxu0 0
        %926 = vmatprep.subr.bf16.mxu0 0
        %927 = vmatpush1.bf16.msra.mxu0 0
        %928 = vmatprep.subr.bf16.mxu0 0
        %929 = vmatpush1.bf16.msra.mxu0 0
        %930 = vmatprep.subr.bf16.mxu0 0
        %931 = vmatpush1.bf16.msra.mxu0 0
        %932 = vmatprep.subr.bf16.mxu0 0
        %933 = vmatpush1.bf16.msra.mxu0 0
        %934 = vmatprep.subr.bf16.mxu0 0
        %935 = vmatpush1.bf16.msra.mxu0 0
        %936 = vmatprep.subr.bf16.mxu0 0
        %937 = vmatpush1.bf16.msra.mxu0 0
        %938 = vmatprep.subr.bf16.mxu0 0
        %939 = vmatpush1.bf16.msra.mxu0 0
        %940 = vmatprep.subr.bf16.mxu0 0
        %941 = vmatpush1.bf16.msra.mxu0 0
        %942 = vmatprep.mubr.bf16.mxu0 0
        %943 = vmatmul.mubr.bf16.gmra.mrb[0].mxu0 %v899
        %v944 = vpop.f32.mrb[0].mxu0
        %v945 = vadd.f32 0.0, %v944
        %v946 = vpop.f32.mrb[0].mxu0
        %v947 = vadd.f32 0.0, %v946
        %v948 = vpop.f32.mrb[0].mxu0
        %v949 = vpop.f32.mrb[0].mxu0
        %950 = vdwg.mxu0
        %951 = vmatprep.subr.bf16.mxu0 0
        %952 = vmatpush1.bf16.msra.mxu0 %v908
        %953 = vmatprep.subr.bf16.mxu0 0
        %954 = vmatpush1.bf16.msra.mxu0 0
        %955 = vmatprep.subr.bf16.mxu0 0
        %956 = vmatpush1.bf16.msra.mxu0 0
        %957 = vmatprep.subr.bf16.mxu0 0
        %958 = vmatpush1.bf16.msra.mxu0 0
        %959 = vmatprep.subr.bf16.mxu0 0
        %960 = vmatpush1.bf16.msra.mxu0 0
        %961 = vmatprep.subr.bf16.mxu0 0
        %962 = vmatpush1.bf16.msra.mxu0 0
        %963 = vmatprep.subr.bf16.mxu0 0
        %964 = vmatpush1.bf16.msra.mxu0 0
        %965 = vmatprep.subr.bf16.mxu0 0
        %966 = vmatpush1.bf16.msra.mxu0 0
        %967 = vmatprep.subr.bf16.mxu0 0
        %968 = vmatpush1.bf16.msra.mxu0 0
        %969 = vmatprep.subr.bf16.mxu0 0
        %970 = vmatpush1.bf16.msra.mxu0 0
        %971 = vmatprep.subr.bf16.mxu0 0
        %972 = vmatpush1.bf16.msra.mxu0 0
        %973 = vmatprep.subr.bf16.mxu0 0
        %974 = vmatpush1.bf16.msra.mxu0 0
        %975 = vmatprep.subr.bf16.mxu0 0
        %976 = vmatpush1.bf16.msra.mxu0 0
        %977 = vmatprep.subr.bf16.mxu0 0
        %978 = vmatpush1.bf16.msra.mxu0 0
        %979 = vmatprep.subr.bf16.mxu0 0
        %980 = vmatpush1.bf16.msra.mxu0 0
        %981 = vmatprep.subr.bf16.mxu0 0
        %982 = vmatpush1.bf16.msra.mxu0 0
        %983 = vmatprep.mubr.bf16.mxu0 0
        %984 = vmatmul.mubr.bf16.gmra.mrb[0].mxu0 %v899
        %v985 = vpop.f32.mrb[0].mxu0
        %v986 = vadd.f32 0.0, %v985
        %v987 = vpop.f32.mrb[0].mxu0
        %v988 = vpop.f32.mrb[0].mxu0
        %v989 = vpop.f32.mrb[0].mxu0
        %990 = vdwg.mxu0
        %v991 = vadd.f32 %v886, %v945
        %v992 = vadd.f32 %v887, %v947
        %v993 = vadd.f32 %v888, %v986
        %994 = vrot.lane.b32.xlu0 %v263, 91
        %v995 = vpop.permute.xlu0 %994
        %996 = vrot.lane.b32.xlu0 %v271, 91
        %v997 = vpop.permute.xlu0 %996
        %998 = vrot.lane.b32.xlu0 %v270, 91
        %v999 = vpop.permute.xlu0 %998
        %vm1000 = vcmask 744448
        %v1001 = vsel %vm1000, %v995, %v997
        %v1002 = vsel %vm1000, %v997, %v999
        %v1004 = vsel %vm281, %v253, 0
        %v1007 = vsel %vm285, %v1001, 0
        %v1010 = vsel %vm285, %v1002, 0
        %v1013 = vsel %vm285, %v999, 0
        %1015 = vmatprep.subr.bf16.mxu0 %v1010
        %1016 = vmatpush1.bf16.msra.mxu0 %v1007
        %1017 = vmatprep.subr.bf16.mxu0 0
        %1018 = vmatpush1.bf16.msra.mxu0 0
        %1019 = vmatprep.subr.bf16.mxu0 0
        %1020 = vmatpush1.bf16.msra.mxu0 0
        %1021 = vmatprep.subr.bf16.mxu0 0
        %1022 = vmatpush1.bf16.msra.mxu0 0
        %1023 = vmatprep.subr.bf16.mxu0 0
        %1024 = vmatpush1.bf16.msra.mxu0 0
        %1025 = vmatprep.subr.bf16.mxu0 0
        %1026 = vmatpush1.bf16.msra.mxu0 0
        %1027 = vmatprep.subr.bf16.mxu0 0
        %1028 = vmatpush1.bf16.msra.mxu0 0
        %1029 = vmatprep.subr.bf16.mxu0 0
        %1030 = vmatpush1.bf16.msra.mxu0 0
        %1031 = vmatprep.subr.bf16.mxu0 0
        %1032 = vmatpush1.bf16.msra.mxu0 0
        %1033 = vmatprep.subr.bf16.mxu0 0
        %1034 = vmatpush1.bf16.msra.mxu0 0
        %1035 = vmatprep.subr.bf16.mxu0 0
        %1036 = vmatpush1.bf16.msra.mxu0 0
        %1037 = vmatprep.subr.bf16.mxu0 0
        %1038 = vmatpush1.bf16.msra.mxu0 0
        %1039 = vmatprep.subr.bf16.mxu0 0
        %1040 = vmatpush1.bf16.msra.mxu0 0
        %1041 = vmatprep.subr.bf16.mxu0 0
        %1042 = vmatpush1.bf16.msra.mxu0 0
        %1043 = vmatprep.subr.bf16.mxu0 0
        %1044 = vmatpush1.bf16.msra.mxu0 0
        %1045 = vmatprep.subr.bf16.mxu0 0
        %1046 = vmatpush1.bf16.msra.mxu0 0
        %1047 = vmatprep.mubr.bf16.mxu0 0
        %1048 = vmatmul.mubr.bf16.gmra.mrb[0].mxu0 %v1004
        %v1049 = vpop.f32.mrb[0].mxu0
        %v1050 = vadd.f32 0.0, %v1049
        %v1051 = vpop.f32.mrb[0].mxu0
        %v1052 = vadd.f32 0.0, %v1051
        %v1053 = vpop.f32.mrb[0].mxu0
        %v1054 = vpop.f32.mrb[0].mxu0
        %1055 = vdwg.mxu0
        %1056 = vmatprep.subr.bf16.mxu0 0
        %1057 = vmatpush1.bf16.msra.mxu0 %v1013
        %1058 = vmatprep.subr.bf16.mxu0 0
        %1059 = vmatpush1.bf16.msra.mxu0 0
        %1060 = vmatprep.subr.bf16.mxu0 0
        %1061 = vmatpush1.bf16.msra.mxu0 0
        %1062 = vmatprep.subr.bf16.mxu0 0
        %1063 = vmatpush1.bf16.msra.mxu0 0
        %1064 = vmatprep.subr.bf16.mxu0 0
        %1065 = vmatpush1.bf16.msra.mxu0 0
        %1066 = vmatprep.subr.bf16.mxu0 0
        %1067 = vmatpush1.bf16.msra.mxu0 0
        %1068 = vmatprep.subr.bf16.mxu0 0
        %1069 = vmatpush1.bf16.msra.mxu0 0
        %1070 = vmatprep.subr.bf16.mxu0 0
        %1071 = vmatpush1.bf16.msra.mxu0 0
        %1072 = vmatprep.subr.bf16.mxu0 0
        %1073 = vmatpush1.bf16.msra.mxu0 0
        %1074 = vmatprep.subr.bf16.mxu0 0
        %1075 = vmatpush1.bf16.msra.mxu0 0
        %1076 = vmatprep.subr.bf16.mxu0 0
        %1077 = vmatpush1.bf16.msra.mxu0 0
        %1078 = vmatprep.subr.bf16.mxu0 0
        %1079 = vmatpush1.bf16.msra.mxu0 0
        %1080 = vmatprep.subr.bf16.mxu0 0
        %1081 = vmatpush1.bf16.msra.mxu0 0
        %1082 = vmatprep.subr.bf16.mxu0 0
        %1083 = vmatpush1.bf16.msra.mxu0 0
        %1084 = vmatprep.subr.bf16.mxu0 0
        %1085 = vmatpush1.bf16.msra.mxu0 0
        %1086 = vmatprep.subr.bf16.mxu0 0
        %1087 = vmatpush1.bf16.msra.mxu0 0
        %1088 = vmatprep.mubr.bf16.mxu0 0
        %1089 = vmatmul.mubr.bf16.gmra.mrb[0].mxu0 %v1004
        %v1090 = vpop.f32.mrb[0].mxu0
        %v1091 = vadd.f32 0.0, %v1090
        %v1092 = vpop.f32.mrb[0].mxu0
        %v1093 = vpop.f32.mrb[0].mxu0
        %v1094 = vpop.f32.mrb[0].mxu0
        %1095 = vdwg.mxu0
        %v1096 = vadd.f32 %v991, %v1050
        %v1097 = vadd.f32 %v992, %v1052
        %v1098 = vadd.f32 %v993, %v1091
        %1099 = vrot.lane.b32.xlu0 %v263, 90
        %v1100 = vpop.permute.xlu0 %1099
        %1101 = vrot.lane.b32.xlu0 %v271, 90
        %v1102 = vpop.permute.xlu0 %1101
        %1103 = vrot.lane.b32.xlu0 %v270, 90
        %v1104 = vpop.permute.xlu0 %1103
        %vm1105 = vcmask 736256
        %v1106 = vsel %vm1105, %v1100, %v1102
        %v1107 = vsel %vm1105, %v1102, %v1104
        %v1109 = vsel %vm281, %v254, 0
        %v1112 = vsel %vm285, %v1106, 0
        %v1115 = vsel %vm285, %v1107, 0
        %v1118 = vsel %vm285, %v1104, 0
        %1120 = vmatprep.subr.bf16.mxu0 %v1115
        %1121 = vmatpush1.bf16.msra.mxu0 %v1112
        %1122 = vmatprep.subr.bf16.mxu0 0
        %1123 = vmatpush1.bf16.msra.mxu0 0
        %1124 = vmatprep.subr.bf16.mxu0 0
        %1125 = vmatpush1.bf16.msra.mxu0 0
        %1126 = vmatprep.subr.bf16.mxu0 0
        %1127 = vmatpush1.bf16.msra.mxu0 0
        %1128 = vmatprep.subr.bf16.mxu0 0
        %1129 = vmatpush1.bf16.msra.mxu0 0
        %1130 = vmatprep.subr.bf16.mxu0 0
        %1131 = vmatpush1.bf16.msra.mxu0 0
        %1132 = vmatprep.subr.bf16.mxu0 0
        %1133 = vmatpush1.bf16.msra.mxu0 0
        %1134 = vmatprep.subr.bf16.mxu0 0
        %1135 = vmatpush1.bf16.msra.mxu0 0
        %1136 = vmatprep.subr.bf16.mxu0 0
        %1137 = vmatpush1.bf16.msra.mxu0 0
        %1138 = vmatprep.subr.bf16.mxu0 0
        %1139 = vmatpush1.bf16.msra.mxu0 0
        %1140 = vmatprep.subr.bf16.mxu0 0
        %1141 = vmatpush1.bf16.msra.mxu0 0
        %1142 = vmatprep.subr.bf16.mxu0 0
        %1143 = vmatpush1.bf16.msra.mxu0 0
        %1144 = vmatprep.subr.bf16.mxu0 0
        %1145 = vmatpush1.bf16.msra.mxu0 0
        %1146 = vmatprep.subr.bf16.mxu0 0
        %1147 = vmatpush1.bf16.msra.mxu0 0
        %1148 = vmatprep.subr.bf16.mxu0 0
        %1149 = vmatpush1.bf16.msra.mxu0 0
        %1150 = vmatprep.subr.bf16.mxu0 0
        %1151 = vmatpush1.bf16.msra.mxu0 0
        %1152 = vmatprep.mubr.bf16.mxu0 0
        %1153 = vmatmul.mubr.bf16.gmra.mrb[0].mxu0 %v1109
        %v1154 = vpop.f32.mrb[0].mxu0
        %v1155 = vadd.f32 0.0, %v1154
        %v1156 = vpop.f32.mrb[0].mxu0
        %v1157 = vadd.f32 0.0, %v1156
        %v1158 = vpop.f32.mrb[0].mxu0
        %v1159 = vpop.f32.mrb[0].mxu0
        %1160 = vdwg.mxu0
        %1161 = vmatprep.subr.bf16.mxu0 0
        %1162 = vmatpush1.bf16.msra.mxu0 %v1118
        %1163 = vmatprep.subr.bf16.mxu0 0
        %1164 = vmatpush1.bf16.msra.mxu0 0
        %1165 = vmatprep.subr.bf16.mxu0 0
        %1166 = vmatpush1.bf16.msra.mxu0 0
        %1167 = vmatprep.subr.bf16.mxu0 0
        %1168 = vmatpush1.bf16.msra.mxu0 0
        %1169 = vmatprep.subr.bf16.mxu0 0
        %1170 = vmatpush1.bf16.msra.mxu0 0
        %1171 = vmatprep.subr.bf16.mxu0 0
        %1172 = vmatpush1.bf16.msra.mxu0 0
        %1173 = vmatprep.subr.bf16.mxu0 0
        %1174 = vmatpush1.bf16.msra.mxu0 0
        %1175 = vmatprep.subr.bf16.mxu0 0
        %1176 = vmatpush1.bf16.msra.mxu0 0
        %1177 = vmatprep.subr.bf16.mxu0 0
        %1178 = vmatpush1.bf16.msra.mxu0 0
        %1179 = vmatprep.subr.bf16.mxu0 0
        %1180 = vmatpush1.bf16.msra.mxu0 0
        %1181 = vmatprep.subr.bf16.mxu0 0
        %1182 = vmatpush1.bf16.msra.mxu0 0
        %1183 = vmatprep.subr.bf16.mxu0 0
        %1184 = vmatpush1.bf16.msra.mxu0 0
        %1185 = vmatprep.subr.bf16.mxu0 0
        %1186 = vmatpush1.bf16.msra.mxu0 0
        %1187 = vmatprep.subr.bf16.mxu0 0
        %1188 = vmatpush1.bf16.msra.mxu0 0
        %1189 = vmatprep.subr.bf16.mxu0 0
        %1190 = vmatpush1.bf16.msra.mxu0 0
        %1191 = vmatprep.subr.bf16.mxu0 0
        %1192 = vmatpush1.bf16.msra.mxu0 0
        %1193 = vmatprep.mubr.bf16.mxu0 0
        %1194 = vmatmul.mubr.bf16.gmra.mrb[0].mxu0 %v1109
        %v1195 = vpop.f32.mrb[0].mxu0
        %v1196 = vadd.f32 0.0, %v1195
        %v1197 = vpop.f32.mrb[0].mxu0
        %v1198 = vpop.f32.mrb[0].mxu0
        %v1199 = vpop.f32.mrb[0].mxu0
        %1200 = vdwg.mxu0
        %v1201 = vadd.f32 %v1096, %v1155
        %v1202 = vadd.f32 %v1097, %v1157
        %v1203 = vadd.f32 %v1098, %v1196
        %v1204 = vld [vmem:[%s2] sm:$0x7]
        %v1206 = vlaneseq
        %v1207 = vshrl.u32 %v1206, 7
        %v1208 = vsub.s32 0, %v1207
        %v1209 = vrot.slane %v1204, %v1208
        %v1210 = vlaneseq
        %v1211 = vshrl.u32 %v1210, 7
        %v1212 = vsub.s32 1, %v1211
        %v1213 = vrot.slane %v1204, %v1212
        %v1214 = vlaneseq
        %v1215 = vshrl.u32 %v1214, 7
        %v1216 = vsub.s32 2, %v1215
        %v1217 = vrot.slane %v1204, %v1216
        %v1221 = vmul.f32 %v1201, %v1209
        %v1222 = vmul.f32 %v1202, %v1213
        %v1223 = vmul.f32 %v1203, %v1217
        %v1224 = vadd.f32 %v1221, %v1222
        %vm1225 = vcmask 261120
        %v1226 = vsel %vm1225, %v1223, 0.0
        %v1227 = vadd.f32 %v1224, %v1226
        %1228 = vadd.xlane.f32.xlu0 %v1227
        %v1229 = vpop.xlane.xlu0 %1228
        %vm1230 = vcmask 7168
        %1231 = vst.msk [vmem:[%s239] sm:$0xff] %vm1230, %v1229
        %v1232 = vmul.f32 %v1221, %v1201
        %v1233 = vmul.f32 %v1222, %v1202
        %v1234 = vmul.f32 %v1223, %v1203
        %v1235 = vadd.f32 %v1232, %v1233
        %v1236 = vsel %vm1225, %v1234, 0.0
        %v1237 = vadd.f32 %v1235, %v1236
        %1238 = vadd.xlane.f32.xlu0 %v1237
        %v1239 = vpop.xlane.xlu0 %1238
        %1240 = vst.msk [vmem:[%s243] sm:$0xff] %vm1230, %v1239
        %v1241 = vpack.c.bf16 %v1201, %v1201
        %v1242 = vpack.c.bf16 %v1202, %v1202
        %v1243 = vpack.c.bf16 %v1203, %v1203
        %v1247 = vunpack.c.l.b16 %v1241
        %v1248 = vunpack.c.l.b16 %v1242
        %v1249 = vunpack.c.l.b16 %v1243
        %v1250 = vpack.c.b16 %v1248, %v1247
        %v1251 = vpack.c.b16 %v1249, %v1249
        %1254 = vst [vmem:[%s218] sm:$0xff] %v1250
        %vm1255 = vcmask 257024
        %1256 = vst.msk [vmem:[%s218 + $0x8] sm:$0xf] %vm1255, %v1251
        %s1257 = sand.u32 %s96, 1
        %s1258 = scalar_lea.sflag [#allocation3], %s1257
        %s1259 = sand.u32 %s96, 1
        %s1260 = smul.addr %s1259, 12
        %s1261 = scalar_lea.vmem [#allocation2], %s1260
        %p1262 = scmp.lt.s32.totalorder %s20, 1
        %s1263 = scalar_select %p1262, %s20, 1
        %s1264 = smul.addr %s1263, 8
        %s1265 = scalar_lea.vmem %s4, %s1264
        %p1266 = scmp.lt.s32.totalorder %s20, 1
        %s1267 = scalar_select %p1266, %s20, 1
        %s1268 = smul.addr %s1267, 8
        %s1269 = scalar_lea.vmem %s5, %s1268
        // Predicated region
        $region33: #{tpu_custom_call.1} parent=31 // pred_check
          %p1270 = pneg %p106
        $region34: #{tpu_custom_call.1} parent=31 // pred_check_branch
          %1272 = sbr.rel (%p1270) target = $region36
        $region35: #{tpu_custom_call.1} parent=31 // pred_region
          %s1274 = ssub.s32 192, 192
          %1275 = vsyncadd %s1258, %s1274
          %s1276 = smul.addr %s20, 3
          %s1277 = smul.addr %s1276, 64
          %s1278 = scalar_lea.hbm %s3, %s1277
          %s1280 = sshll.u32 %s1261, 4
          %s1281 = int_to_ptr.vmem [resolvable:$true] %s1280
          %1283 = dma.vmem_to_hbm [thread:$0]  %s1281, 192, %s1278, %s1258
        $region36: #{tpu_custom_call.1} parent=31 // pred_fallthru
          _
        // Predicated region
        $region37: #{tpu_custom_call.1} parent=31 // pred_check
          %p1284 = pneg %p132
        $region38: #{tpu_custom_call.1} parent=31 // pred_check_branch
          %1286 = sbr.rel (%p1284) target = $region40
        $region39: #{tpu_custom_call.1} parent=31 // pred_region
          _
        $region40: #{tpu_custom_call.1} parent=31 // pred_fallthru
          _
        // Predicated region
        $region41: #{tpu_custom_call.1} parent=31 // pred_check
          %p1287 = pneg %p158
        $region42: #{tpu_custom_call.1} parent=31 // pred_check_branch
          %1289 = sbr.rel (%p1287) target = $region44
        $region43: #{tpu_custom_call.1} parent=31 // pred_region
          _
        $region44: #{tpu_custom_call.1} parent=31 // pred_fallthru
          _
      $region32: #{tpu_custom_call.1} parent=5 // pred_fallthru
        _
      %p1290 = scmp.le.s32.totalorder 2, %s15
      // Predicated region
      $region45: #{tpu_custom_call.1} parent=5 // pred_check
        %p1291 = pneg %p1290
      $region46: #{tpu_custom_call.1} parent=5 // pred_check_branch
        %1293 = sbr.rel (%p1291) target = $region48
      $region47: #{tpu_custom_call.1} parent=5 // pred_region
        %s1294 = ssub.s32 %s15, 2
        // Predicated region
        $region49: #{tpu_custom_call.1} parent=47 // pred_check
          %p1295 = pneg %p112
        $region50: #{tpu_custom_call.1} parent=47 // pred_check_branch
          %1297 = sbr.rel (%p1295) target = $region52
        $region51: #{tpu_custom_call.1} parent=47 // pred_region
          %s1298 = sand.u32 %s97, 1
          %s1299 = scalar_lea.sflag [#allocation3], %s1298
          %s1300 = sand.u32 %s97, 1
          %s1301 = smul.addr %s1300, 12
          %s1302 = scalar_lea.vmem [#allocation2], %s1301
          %1303 = dma.done %s1299, 192
        $region52: #{tpu_custom_call.1} parent=47 // pred_fallthru
          _
        // Predicated region
        $region53: #{tpu_custom_call.1} parent=47 // pred_check
          %p1304 = pneg %p138
        $region54: #{tpu_custom_call.1} parent=47 // pred_check_branch
          %1306 = sbr.rel (%p1304) target = $region56
        $region55: #{tpu_custom_call.1} parent=47 // pred_region
          %p1307 = scmp.lt.s32.totalorder %s21, 1
          %s1308 = scalar_select %p1307, %s21, 1
          %s1309 = smul.addr %s1308, 8
          %s1310 = scalar_lea.vmem %s4, %s1309
        $region56: #{tpu_custom_call.1} parent=47 // pred_fallthru
          _
        // Predicated region
        $region57: #{tpu_custom_call.1} parent=47 // pred_check
          %p1311 = pneg %p164
        $region58: #{tpu_custom_call.1} parent=47 // pred_check_branch
          %1313 = sbr.rel (%p1311) target = $region60
        $region59: #{tpu_custom_call.1} parent=47 // pred_region
          %p1314 = scmp.lt.s32.totalorder %s21, 1
          %s1315 = scalar_select %p1314, %s21, 1
          %s1316 = smul.addr %s1315, 8
          %s1317 = scalar_lea.vmem %s5, %s1316
        $region60: #{tpu_custom_call.1} parent=47 // pred_fallthru
          _
      $region48: #{tpu_custom_call.1} parent=5 // pred_fallthru
        _
    $region6: #{tpu_custom_call.1} parent=1 // loop_footer
      %s19 = sadd.s32 1, %s15
    $region7: #{tpu_custom_call.1} parent=1 // loop_footer_branch
      %14 = sbr.rel target = $region3
    $region8: #{tpu_custom_call.1} parent=1 // loop_exit
      _
    %1318 = vsyncpa [#allocation3], 1
    %s1319 = scalar_lea.sflag [#allocation3], 1
    %1320 = vsyncpa %s1319, 1

</llo_original>
